<compile_context>
chip_gen: v5e
topology: v5e:2x2
jax: 0.10.0
libtpu: 0.0.40
codegen_flags: <defaults>
</compile_context>

<pallas_src>
import jax
import jax.numpy as jnp
from jax.experimental import pallas as pl
from jax.experimental.pallas import tpu as pltpu

LANE = 128      # TPU vreg lane width
GRANULE = 16    # sublane granule safe for bf16 and f32 tiles


def _round_up(x, m):
    return ((x + m - 1) // m) * m


def _tensorcores_per_device():
    """v7x packs 2 TensorCores per JAX device; v5e/v6e expose 1.

    (Megacore chips such as v4/v5p also have 2 TCs but are not a review
    target; defaulting them to 1 is merely conservative.)"""
    try:
        kind = jax.devices()[0].device_kind.lower()
    except Exception:
        return 1
    return 2 if "v7" in kind else 1


def _pick_batch_tile(B, row_bytes, n_cores, vmem_budget=8 << 20):
    """Rows per grid step.

    n_cores == 1: one grid step whenever the streamed x/out tile fits a
    conservative VMEM budget (every extra step is pure serial overhead here).
    n_cores == 2: an exact multiple of 2 steps (ideally exactly 2) so the
    "parallel" grid axis shards evenly across both TensorCores.
    """
    max_rows = max(GRANULE,
                   (vmem_budget // max(row_bytes, 1)) // GRANULE * GRANULE)
    if n_cores <= 1 or B <= 8:
        if B <= max_rows:
            return B                       # grid=(1,), block == full array
        steps = -(-B // max_rows)
    else:
        steps = n_cores                    # even split across TensorCores
        while -(-B // steps) > max_rows:
            steps += n_cores
    tile = -(-B // steps)
    return max(GRANULE, -(-tile // GRANULE) * GRANULE)


def _make_kernel(compute_dtype):
    def mlp_kernel(x_ref, w_ref, b_ref, o_ref):
        # w_ref: (4, pmax, pmax) packed weights, b_ref: (4, pmax) f32 biases.
        # Both are VMEM-resident across grid steps (constant index_map);
        # static w_ref[k] slices are free. Only x / out stream per batch tile.
        b = b_ref[...]

        h = jnp.dot(x_ref[...], w_ref[0], preferred_element_type=jnp.float32)
        h = jnp.maximum(h + b[0:1, :], 0.0).astype(compute_dtype)

        h = jnp.dot(h, w_ref[1], preferred_element_type=jnp.float32)
        h = jnp.maximum(h + b[1:2, :], 0.0).astype(compute_dtype)

        h = jnp.dot(h, w_ref[2], preferred_element_type=jnp.float32)
        h = jnp.maximum(h + b[2:3, :], 0.0).astype(compute_dtype)

        out = jnp.dot(h, w_ref[3], preferred_element_type=jnp.float32) + b[3:4, :]
        o_ref[...] = out.astype(o_ref.dtype)   # lane-dense, unmasked store

    return mlp_kernel


def more_layers_network_forward(state, params, *, batch_tile=None,
                                compute_dtype=jnp.bfloat16, out_dtype=None):
    """Pallas forward for MoreLayersNetworkDiffrentOptimizer.

    state:  (B, input_dim) float32
    params: dict with w1..w4 shaped (in, out) and b1..b4 shaped (1, out), f32

    NOTE: default compute_dtype / out_dtype are bfloat16 (intentional speed
    trade); pass compute_dtype=jnp.float32 for close-to-PyTorch numerics.
    """
    B, input_dim = state.shape
    if out_dtype is None:
        out_dtype = compute_dtype

    ws = [params[f"w{i}"] for i in range(1, 5)]
    bs = [params[f"b{i}"] for i in range(1, 5)]
    fc1_dim, fc2_dim, fc3_dim = ws[0].shape[1], ws[1].shape[1], ws[2].shape[1]
    n_action = ws[3].shape[1]

    # One common padded width for every layer (multiple of 128 lanes). Zero
    # padding keeps the valid columns bit-exact through dot/bias/ReLU chains.
    pmax = _round_up(max(input_dim, fc1_dim, fc2_dim, fc3_dim, n_action), LANE)

    def pad2(a, rows, cols):
        return jnp.pad(a, ((0, rows - a.shape[0]), (0, cols - a.shape[1])))

    # Packed, zero-padded operands: ONE weight stack + ONE bias block.
    w_all = jnp.stack(
        [pad2(w, pmax, pmax).astype(compute_dtype) for w in ws], axis=0)
    b_all = jnp.concatenate(
        [pad2(b.reshape(1, -1).astype(jnp.float32), 1, pmax) for b in bs], axis=0)
    # Pad-to-pmax invariant the kernel's full-width bias slices rely on.
    assert w_all.shape == (4, pmax, pmax) and b_all.shape == (4, pmax)

    # Batch tiling: per-generation grid sizing.
    c_isz = jnp.dtype(compute_dtype).itemsize
    o_isz = jnp.dtype(out_dtype).itemsize
    # x (double-buffered) + out (double-buffered) + ~3 live f32 temps + cast h.
    row_bytes = pmax * (2 * c_isz + 2 * o_isz + 3 * 4 + c_isz)
    if batch_tile is None:
        tile = _pick_batch_tile(B, row_bytes, _tensorcores_per_device())
    else:
        tile = min(batch_tile, B)
        if tile != B:
            tile = max(GRANULE, (tile // GRANULE) * GRANULE)

    grid_steps = -(-B // tile)
    B_pad = grid_steps * tile

    # Streamed input: cast to compute dtype, pad rows (no ragged last block)
    # and lanes (dense K for the packed weight stack).
    x_p = pad2(state.astype(compute_dtype), B_pad, pmax)

    kernel = _make_kernel(compute_dtype)

    def build_call(single_buffer):
        def const_spec(shape):
            nd = len(shape)
            kwargs = dict(pipeline_mode=pl.Buffered(1)) if single_buffer else {}
            return pl.BlockSpec(shape, lambda i: (0,) * nd, **kwargs)

        return pl.pallas_call(
            kernel,
            out_shape=jax.ShapeDtypeStruct((B_pad, pmax), out_dtype),
            grid_spec=pltpu.PrefetchScalarGridSpec(
                num_scalar_prefetch=0,
                grid=(grid_steps,),
                in_specs=[
                    pl.BlockSpec((tile, pmax), lambda i: (i, 0)),  # x tile
                    const_spec(w_all.shape),                       # packed W
                    const_spec(b_all.shape),                       # packed b
                ],
                out_specs=pl.BlockSpec((tile, pmax), lambda i: (i, 0)),
            ),
            compiler_params=pltpu.CompilerParams(
                dimension_semantics=("parallel",),
                vmem_limit_bytes=32 * 1024 * 1024,
            ),
        )

    try:
        out_padded = build_call(True)(x_p, w_all, b_all)
    except Exception:
        # pl.Buffered(1) not accepted on this jax version: fall back to the
        # default double-buffered resident operands (tiny VMEM cost here).
        out_padded = build_call(False)(x_p, w_all, b_all)

    # Drop row/lane padding.
    return out_padded[:B, :n_action]


def init_params(key, input_dim, fc1_dim, fc2_dim, fc3_dim, n_action):
    """Mimics nn.Linear's U(-1/sqrt(fan_in), 1/sqrt(fan_in)) init."""
    dims = [(input_dim, fc1_dim), (fc1_dim, fc2_dim),
            (fc2_dim, fc3_dim), (fc3_dim, n_action)]
    params = {}
    for idx, (fan_in, fan_out) in enumerate(dims, start=1):
        key, kw, kb = jax.random.split(key, 3)
        bound = 1.0 / jnp.sqrt(float(fan_in))
        # Stored as (in, out) == transpose of PyTorch's (out, in) layout.
        params[f"w{idx}"] = jax.random.uniform(
            kw, (fan_in, fan_out), jnp.float32, -bound, bound)
        params[f"b{idx}"] = jax.random.uniform(
            kb, (1, fan_out), jnp.float32, -bound, bound)
    return params


def reference_forward(state, params, compute_dtype=jnp.float32):
    """Pure-JAX reference mirroring the kernel's dtype handling."""
    h = state.astype(compute_dtype)
    for idx in range(1, 4):
        w = params[f"w{idx}"].astype(compute_dtype)
        h = jnp.dot(h, w, preferred_element_type=jnp.float32) + params[f"b{idx}"]
        h = jnp.maximum(h, 0.0).astype(compute_dtype)
    w4 = params["w4"].astype(compute_dtype)
    return jnp.dot(h, w4, preferred_element_type=jnp.float32) + params["b4"]


if __name__ == "__main__":
    key = jax.random.PRNGKey(0)
    # Small shapes consistent with the module's MLP forward; batch large enough
    # that the v7x path exercises an exact 2-way "parallel" grid split.
    batch, input_dim = 256, 32
    fc1_dim, fc2_dim, fc3_dim, n_action = 64, 64, 32, 16
    # TODO(synk): fc4_dim, lr, loss and the Adagrad optimizer are training-time
    # attributes that never affect forward(); not represented in the kernel.

    key, kx = jax.random.split(key)
    state = jax.random.normal(kx, (batch, input_dim), jnp.float32)
    params = init_params(key, input_dim, fc1_dim, fc2_dim, fc3_dim, n_action)

    # f32 operand path: matches the plain f32 reference tightly.
    out_f32 = more_layers_network_forward(state, params,
                                          compute_dtype=jnp.float32)
    out_f32 = jax.block_until_ready(out_f32)
    ref_f32 = reference_forward(state, params, jnp.float32)
    assert out_f32.shape == (batch, n_action)
    assert jnp.allclose(out_f32, ref_f32, atol=5e-4, rtol=5e-4), \
        "f32 kernel mismatch vs reference"

    # Default bf16-operand / bf16-output path (MXU-native, halved writeback).
    out_bf16 = more_layers_network_forward(state, params)
    out_bf16 = jax.block_until_ready(out_bf16)
    ref_bf16 = reference_forward(state, params, jnp.bfloat16)
    assert out_bf16.shape == (batch, n_action)
    assert out_bf16.dtype == jnp.bfloat16
    assert jnp.allclose(out_bf16.astype(jnp.float32),
                        ref_bf16.astype(jnp.float32),
                        atol=1e-2, rtol=1e-2), "bf16 kernel mismatch vs reference"

    print("KERNEL_OK")
</pallas_src>

<mosaic_0001>
module attributes {stable_mosaic.version = 11 : i64} {
  func.func @mlp_kernel(%arg0: i32, %arg1: memref<256x128xf32, #tpu.memory_space<vmem>>, %arg2: memref<4x128x128xf32, #tpu.memory_space<vmem>>, %arg3: memref<4x128xf32, #tpu.memory_space<vmem>>, %arg4: memref<256x128xf32, #tpu.memory_space<vmem>>) attributes {dimension_semantics = [#tpu.dimension_semantics<parallel>], iteration_bounds = array<i64: 1>, scalar_prefetch = 0 : i64, scratch_operands = 0 : i64, tpu.core_type = #tpu.core_type<tc>, window_params = [{transform_indices = @transform_0, window_bounds = array<i64: 256, 128>}, {pipeline_mode = #tpu.pipeline_mode<synchronous>, transform_indices = @transform_1, window_bounds = array<i64: 4, 128, 128>}, {pipeline_mode = #tpu.pipeline_mode<synchronous>, transform_indices = @transform_2, window_bounds = array<i64: 4, 128>}, {transform_indices = @transform_3, window_bounds = array<i64: 256, 128>}]} {
    %c0 = arith.constant 0 : index
    %c0_0 = arith.constant 0 : index
    %0 = vector.load %arg3[%c0, %c0_0] : memref<4x128xf32, #tpu.memory_space<vmem>>, vector<4x128xf32>
    %c0_1 = arith.constant 0 : index
    %c0_2 = arith.constant 0 : index
    %1 = vector.load %arg1[%c0_1, %c0_2] : memref<256x128xf32, #tpu.memory_space<vmem>>, vector<256x128xf32>
    %c0_3 = arith.constant 0 : index
    %c0_4 = arith.constant 0 : index
    %c0_5 = arith.constant 0 : index
    %2 = vector.load %arg2[%c0_3, %c0_4, %c0_5] : memref<4x128x128xf32, #tpu.memory_space<vmem>>, vector<1x128x128xf32>
    %3 = vector.shape_cast %2 : vector<1x128x128xf32> to vector<128x128xf32>
    %cst = arith.constant dense<0.000000e+00> : vector<256x128xf32>
    %4 = tpu.matmul %1, %3, %cst {dimension_numbers = #tpu.dot_dimension_numbers<[1], [0], [0], [1], [0, 0, 1, 1], [], []>} : vector<256x128xf32>, vector<128x128xf32>, vector<256x128xf32> -> vector<256x128xf32>
    %5 = vector.extract_strided_slice %0 {offsets = [0, 0], sizes = [1, 128], strides = [1, 1]} : vector<4x128xf32> to vector<1x128xf32>
    %6 = vector.broadcast %5 : vector<1x128xf32> to vector<256x128xf32>
    %7 = arith.addf %4, %6 : vector<256x128xf32>
    %cst_6 = arith.constant 0.000000e+00 : f32
    %8 = vector.broadcast %cst_6 : f32 to vector<256x128xf32>
    %9 = arith.maximumf %7, %8 : vector<256x128xf32>
    %c1 = arith.constant 1 : index
    %c0_7 = arith.constant 0 : index
    %c0_8 = arith.constant 0 : index
    %10 = vector.load %arg2[%c1, %c0_7, %c0_8] : memref<4x128x128xf32, #tpu.memory_space<vmem>>, vector<1x128x128xf32>
    %11 = vector.shape_cast %10 : vector<1x128x128xf32> to vector<128x128xf32>
    %cst_9 = arith.constant dense<0.000000e+00> : vector<256x128xf32>
    %12 = tpu.matmul %9, %11, %cst_9 {dimension_numbers = #tpu.dot_dimension_numbers<[1], [0], [0], [1], [0, 0, 1, 1], [], []>} : vector<256x128xf32>, vector<128x128xf32>, vector<256x128xf32> -> vector<256x128xf32>
    %13 = vector.extract_strided_slice %0 {offsets = [1, 0], sizes = [1, 128], strides = [1, 1]} : vector<4x128xf32> to vector<1x128xf32>
    %14 = vector.broadcast %13 : vector<1x128xf32> to vector<256x128xf32>
    %15 = arith.addf %12, %14 : vector<256x128xf32>
    %cst_10 = arith.constant 0.000000e+00 : f32
    %16 = vector.broadcast %cst_10 : f32 to vector<256x128xf32>
    %17 = arith.maximumf %15, %16 : vector<256x128xf32>
    %c2 = arith.constant 2 : index
    %c0_11 = arith.constant 0 : index
    %c0_12 = arith.constant 0 : index
    %18 = vector.load %arg2[%c2, %c0_11, %c0_12] : memref<4x128x128xf32, #tpu.memory_space<vmem>>, vector<1x128x128xf32>
    %19 = vector.shape_cast %18 : vector<1x128x128xf32> to vector<128x128xf32>
    %cst_13 = arith.constant dense<0.000000e+00> : vector<256x128xf32>
    %20 = tpu.matmul %17, %19, %cst_13 {dimension_numbers = #tpu.dot_dimension_numbers<[1], [0], [0], [1], [0, 0, 1, 1], [], []>} : vector<256x128xf32>, vector<128x128xf32>, vector<256x128xf32> -> vector<256x128xf32>
    %21 = vector.extract_strided_slice %0 {offsets = [2, 0], sizes = [1, 128], strides = [1, 1]} : vector<4x128xf32> to vector<1x128xf32>
    %22 = vector.broadcast %21 : vector<1x128xf32> to vector<256x128xf32>
    %23 = arith.addf %20, %22 : vector<256x128xf32>
    %cst_14 = arith.constant 0.000000e+00 : f32
    %24 = vector.broadcast %cst_14 : f32 to vector<256x128xf32>
    %25 = arith.maximumf %23, %24 : vector<256x128xf32>
    %c3 = arith.constant 3 : index
    %c0_15 = arith.constant 0 : index
    %c0_16 = arith.constant 0 : index
    %26 = vector.load %arg2[%c3, %c0_15, %c0_16] : memref<4x128x128xf32, #tpu.memory_space<vmem>>, vector<1x128x128xf32>
    %27 = vector.shape_cast %26 : vector<1x128x128xf32> to vector<128x128xf32>
    %cst_17 = arith.constant dense<0.000000e+00> : vector<256x128xf32>
    %28 = tpu.matmul %25, %27, %cst_17 {dimension_numbers = #tpu.dot_dimension_numbers<[1], [0], [0], [1], [0, 0, 1, 1], [], []>} : vector<256x128xf32>, vector<128x128xf32>, vector<256x128xf32> -> vector<256x128xf32>
    %29 = vector.extract_strided_slice %0 {offsets = [3, 0], sizes = [1, 128], strides = [1, 1]} : vector<4x128xf32> to vector<1x128xf32>
    %30 = vector.broadcast %29 : vector<1x128xf32> to vector<256x128xf32>
    %31 = arith.addf %28, %30 : vector<256x128xf32>
    %c0_18 = arith.constant 0 : index
    %c0_19 = arith.constant 0 : index
    %32 = vector.load %arg4[%c0_18, %c0_19] : memref<256x128xf32, #tpu.memory_space<vmem>>, vector<256x128xf32>
    tpu.vector_store %arg4[%c0_18, %c0_19], %31 {strides = array<i32>} : memref<256x128xf32, #tpu.memory_space<vmem>>, vector<256x128xf32>,
    return
  }
  func.func @transform_0(%arg0: i32) -> (i32, i32) {
    %c0_i32 = arith.constant 0 : i32
    %c0_i32_0 = arith.constant 0 : i32
    return %arg0, %c0_i32 : i32, i32
  }
  func.func @transform_1(%arg0: i32) -> (i32, i32, i32) {
    %c0_i32 = arith.constant 0 : i32
    %c0_i32_0 = arith.constant 0 : i32
    %c0_i32_1 = arith.constant 0 : i32
    %c0_i32_2 = arith.constant 0 : i32
    return %c0_i32, %c0_i32_0, %c0_i32_1 : i32, i32, i32
  }
  func.func @transform_2(%arg0: i32) -> (i32, i32) {
    %c0_i32 = arith.constant 0 : i32
    %c0_i32_0 = arith.constant 0 : i32
    %c0_i32_1 = arith.constant 0 : i32
    return %c0_i32, %c0_i32_0 : i32, i32
  }
  func.func @transform_3(%arg0: i32) -> (i32, i32) {
    %c0_i32 = arith.constant 0 : i32
    %c0_i32_0 = arith.constant 0 : i32
    return %arg0, %c0_i32 : i32, i32
  }
}

module attributes {stable_mosaic.version = 11 : i64} {
  func.func @mlp_kernel(%arg0: i32, %arg1: memref<256x128xf32, #tpu.memory_space<vmem>>, %arg2: memref<4x128x128xf32, #tpu.memory_space<vmem>>, %arg3: memref<4x128xf32, #tpu.memory_space<vmem>>, %arg4: memref<256x128xf32, #tpu.memory_space<vmem>>) attributes {dimension_semantics = [#tpu.dimension_semantics<parallel>], iteration_bounds = array<i64: 1>, scalar_prefetch = 0 : i64, scratch_operands = 0 : i64, tpu.core_type = #tpu.core_type<tc>, window_params = [{transform_indices = @transform_0, window_bounds = array<i64: 256, 128>}, {pipeline_mode = #tpu.pipeline_mode<synchronous>, transform_indices = @transform_1, window_bounds = array<i64: 4, 128, 128>}, {pipeline_mode = #tpu.pipeline_mode<synchronous>, transform_indices = @transform_2, window_bounds = array<i64: 4, 128>}, {transform_indices = @transform_3, window_bounds = array<i64: 256, 128>}]} {
    %c0 = arith.constant 0 : index
    %c0_0 = arith.constant 0 : index
    %0 = vector.load %arg3[%c0, %c0_0] : memref<4x128xf32, #tpu.memory_space<vmem>>, vector<4x128xf32>
    %c0_1 = arith.constant 0 : index
    %c0_2 = arith.constant 0 : index
    %1 = vector.load %arg1[%c0_1, %c0_2] : memref<256x128xf32, #tpu.memory_space<vmem>>, vector<256x128xf32>
    %c0_3 = arith.constant 0 : index
    %c0_4 = arith.constant 0 : index
    %c0_5 = arith.constant 0 : index
    %2 = vector.load %arg2[%c0_3, %c0_4, %c0_5] : memref<4x128x128xf32, #tpu.memory_space<vmem>>, vector<1x128x128xf32>
    %3 = vector.shape_cast %2 : vector<1x128x128xf32> to vector<128x128xf32>
    %cst = arith.constant dense<0.000000e+00> : vector<256x128xf32>
    %4 = tpu.matmul %1, %3, %cst {dimension_numbers = #tpu.dot_dimension_numbers<[1], [0], [0], [1], [0, 0, 1, 1], [], []>} : vector<256x128xf32>, vector<128x128xf32>, vector<256x128xf32> -> vector<256x128xf32>
    %5 = vector.extract_strided_slice %0 {offsets = [0, 0], sizes = [1, 128], strides = [1, 1]} : vector<4x128xf32> to vector<1x128xf32>
    %6 = vector.broadcast %5 : vector<1x128xf32> to vector<256x128xf32>
    %7 = arith.addf %4, %6 : vector<256x128xf32>
    %cst_6 = arith.constant 0.000000e+00 : f32
    %8 = vector.broadcast %cst_6 : f32 to vector<256x128xf32>
    %9 = arith.maximumf %7, %8 : vector<256x128xf32>
    %c1 = arith.constant 1 : index
    %c0_7 = arith.constant 0 : index
    %c0_8 = arith.constant 0 : index
    %10 = vector.load %arg2[%c1, %c0_7, %c0_8] : memref<4x128x128xf32, #tpu.memory_space<vmem>>, vector<1x128x128xf32>
    %11 = vector.shape_cast %10 : vector<1x128x128xf32> to vector<128x128xf32>
    %cst_9 = arith.constant dense<0.000000e+00> : vector<256x128xf32>
    %12 = tpu.matmul %9, %11, %cst_9 {dimension_numbers = #tpu.dot_dimension_numbers<[1], [0], [0], [1], [0, 0, 1, 1], [], []>} : vector<256x128xf32>, vector<128x128xf32>, vector<256x128xf32> -> vector<256x128xf32>
    %13 = vector.extract_strided_slice %0 {offsets = [1, 0], sizes = [1, 128], strides = [1, 1]} : vector<4x128xf32> to vector<1x128xf32>
    %14 = vector.broadcast %13 : vector<1x128xf32> to vector<256x128xf32>
    %15 = arith.addf %12, %14 : vector<256x128xf32>
    %cst_10 = arith.constant 0.000000e+00 : f32
    %16 = vector.broadcast %cst_10 : f32 to vector<256x128xf32>
    %17 = arith.maximumf %15, %16 : vector<256x128xf32>
    %c2 = arith.constant 2 : index
    %c0_11 = arith.constant 0 : index
    %c0_12 = arith.constant 0 : index
    %18 = vector.load %arg2[%c2, %c0_11, %c0_12] : memref<4x128x128xf32, #tpu.memory_space<vmem>>, vector<1x128x128xf32>
    %19 = vector.shape_cast %18 : vector<1x128x128xf32> to vector<128x128xf32>
    %cst_13 = arith.constant dense<0.000000e+00> : vector<256x128xf32>
    %20 = tpu.matmul %17, %19, %cst_13 {dimension_numbers = #tpu.dot_dimension_numbers<[1], [0], [0], [1], [0, 0, 1, 1], [], []>} : vector<256x128xf32>, vector<128x128xf32>, vector<256x128xf32> -> vector<256x128xf32>
    %21 = vector.extract_strided_slice %0 {offsets = [2, 0], sizes = [1, 128], strides = [1, 1]} : vector<4x128xf32> to vector<1x128xf32>
    %22 = vector.broadcast %21 : vector<1x128xf32> to vector<256x128xf32>
    %23 = arith.addf %20, %22 : vector<256x128xf32>
    %cst_14 = arith.constant 0.000000e+00 : f32
    %24 = vector.broadcast %cst_14 : f32 to vector<256x128xf32>
    %25 = arith.maximumf %23, %24 : vector<256x128xf32>
    %c3 = arith.constant 3 : index
    %c0_15 = arith.constant 0 : index
    %c0_16 = arith.constant 0 : index
    %26 = vector.load %arg2[%c3, %c0_15, %c0_16] : memref<4x128x128xf32, #tpu.memory_space<vmem>>, vector<1x128x128xf32>
    %27 = vector.shape_cast %26 : vector<1x128x128xf32> to vector<128x128xf32>
    %cst_17 = arith.constant dense<0.000000e+00> : vector<256x128xf32>
    %28 = tpu.matmul %25, %27, %cst_17 {dimension_numbers = #tpu.dot_dimension_numbers<[1], [0], [0], [1], [0, 0, 1, 1], [], []>} : vector<256x128xf32>, vector<128x128xf32>, vector<256x128xf32> -> vector<256x128xf32>
    %29 = vector.extract_strided_slice %0 {offsets = [3, 0], sizes = [1, 128], strides = [1, 1]} : vector<4x128xf32> to vector<1x128xf32>
    %30 = vector.broadcast %29 : vector<1x128xf32> to vector<256x128xf32>
    %31 = arith.addf %28, %30 : vector<256x128xf32>
    %c0_18 = arith.constant 0 : index
    %c0_19 = arith.constant 0 : index
    %32 = vector.load %arg4[%c0_18, %c0_19] : memref<256x128xf32, #tpu.memory_space<vmem>>, vector<256x128xf32>
    tpu.vector_store %arg4[%c0_18, %c0_19], %31 {strides = array<i32>} : memref<256x128xf32, #tpu.memory_space<vmem>>, vector<256x128xf32>,
    return
  }
  func.func @transform_0(%arg0: i32) -> (i32, i32) {
    %c0_i32 = arith.constant 0 : i32
    %c0_i32_0 = arith.constant 0 : i32
    return %arg0, %c0_i32 : i32, i32
  }
  func.func @transform_1(%arg0: i32) -> (i32, i32, i32) {
    %c0_i32 = arith.constant 0 : i32
    %c0_i32_0 = arith.constant 0 : i32
    %c0_i32_1 = arith.constant 0 : i32
    %c0_i32_2 = arith.constant 0 : i32
    return %c0_i32, %c0_i32_0, %c0_i32_1 : i32, i32, i32
  }
  func.func @transform_2(%arg0: i32) -> (i32, i32) {
    %c0_i32 = arith.constant 0 : i32
    %c0_i32_0 = arith.constant 0 : i32
    %c0_i32_1 = arith.constant 0 : i32
    return %c0_i32, %c0_i32_0 : i32, i32
  }
  func.func @transform_3(%arg0: i32) -> (i32, i32) {
    %c0_i32 = arith.constant 0 : i32
    %c0_i32_0 = arith.constant 0 : i32
    return %arg0, %c0_i32 : i32, i32
  }
}

</mosaic_0001>

<llo_original>
// kernel: tpu_custom_call.1
$region0: #{tpu_custom_call.1}
  #allocation0 [shape = 'u32[]', space=smem, size = 0x4, offset = 0x4, fixed_abs, tag = 'smem constant byte address 0x4 - core index']
  #allocation1 [shape = 'u32[72,128]{1,0:T(1,128)}', space=vmem, size = 0x9000, scoped, tag = 'internal scratch']
  %s0 = inlined_call_operand.hbm [shape: f32[256,128], index: 0, kind: input, shape index: {}]
  %s1 = inlined_call_operand.hbm [shape: f32[4,128,128], index: 1, kind: input, shape index: {}]
  %s2 = inlined_call_operand.hbm [shape: f32[4,128], index: 2, kind: input, shape index: {}]
  %s3 = inlined_call_operand.hbm [shape: f32[256,128], index: 3, kind: output, shape index: {}]
  %s4 = sld [smem:[#allocation0]]
  $region34: #{tpu_custom_call.1} parent=0
    _
  %s6 = ssub.s32 1, %s4
  %s7 = scalar_select 0, %s6, %s4
  $region1: #{tpu_custom_call.1} parent=0
    #allocation2 [shape = 'u8[131072]{0}', space=vmem, size = 0x20000, scoped, tag = 'input window, operand 0, single buffered']
    #allocation3 [shape = 's32[1]{0}', space=sflag, size = 0x4, scoped, tag = 'scoped memory for tpu_custom_call.1']
    #allocation4 [shape = 's32[1]{0}', space=sflag, size = 0x4, scoped, tag = 'scoped memory for tpu_custom_call.1']
    #allocation5 [shape = 'u8[262144]{0}', space=vmem, size = 0x40000, scoped, tag = 'input window, operand 1, single buffered']
    #allocation6 [shape = 's32[1]{0}', space=sflag, size = 0x4, scoped, tag = 'scoped memory for tpu_custom_call.1']
    #allocation7 [shape = 'u8[2048]{0}', space=vmem, size = 0x800, scoped, tag = 'input window, operand 2, single buffered']
    #allocation8 [shape = 'u8[131072]{0}', space=vmem, size = 0x20000, scoped, tag = 'output window, operand 0, single buffered']
    %8 = vsyncpa [#allocation3], 0
    %9 = vsyncpa [#allocation6], 0
    %10 = vsyncpa [#allocation4], 0
    // Predicated region
    $region2: #{tpu_custom_call.1} parent=1 // pred_check
      _
    $region3: #{tpu_custom_call.1} parent=1 // pred_check_branch
      %12 = sbr.rel (0) target = $region5
    $region4: #{tpu_custom_call.1} parent=1 // pred_region
      %14 = vsyncadd [#allocation3], 0
      %s15 = sshll.u32 %s0, 4
      %s16 = int_to_ptr.hbm [resolvable:$true] %s15
      %s17 = sshll.u32 [#allocation2], 4
      %s18 = int_to_ptr.vmem [resolvable:$true] %s17
      %23 = dma.hbm_to_vmem [thread:$0]  %s16, 4096, %s18, [#allocation3], 128, 128, 8
    $region5: #{tpu_custom_call.1} parent=1 // pred_fallthru
      _
    // Predicated region
    $region6: #{tpu_custom_call.1} parent=1 // pred_check
      _
    $region7: #{tpu_custom_call.1} parent=1 // pred_check_branch
      %25 = sbr.rel (0) target = $region9
    $region8: #{tpu_custom_call.1} parent=1 // pred_region
      %27 = vsyncadd [#allocation6], 0
      %s28 = sshll.u32 %s1, 4
      %s29 = int_to_ptr.hbm [resolvable:$true] %s28
      %s30 = sshll.u32 [#allocation5], 4
      %s31 = int_to_ptr.vmem [resolvable:$true] %s30
      %36 = dma.hbm_to_vmem [thread:$0]  %s29, 8192, %s31, [#allocation6], 128, 128, 8
    $region9: #{tpu_custom_call.1} parent=1 // pred_fallthru
      _
    // Predicated region
    $region10: #{tpu_custom_call.1} parent=1 // pred_check
      _
    $region11: #{tpu_custom_call.1} parent=1 // pred_check_branch
      %38 = sbr.rel (0) target = $region13
    $region12: #{tpu_custom_call.1} parent=1 // pred_region
      %40 = vsyncadd [#allocation6], 0
      %s42 = sshll.u32 %s2, 4
      %s43 = int_to_ptr.hbm [resolvable:$true] %s42
      %s44 = sshll.u32 [#allocation7], 4
      %s45 = int_to_ptr.vmem [resolvable:$true] %s44
      %47 = dma.hbm_to_vmem [thread:$0]  %s43, 64, %s45, [#allocation6]
    $region13: #{tpu_custom_call.1} parent=1 // pred_fallthru
      _
    // Predicated region
    $region14: #{tpu_custom_call.1} parent=1 // pred_check
      _
    $region15: #{tpu_custom_call.1} parent=1 // pred_check_branch
      %49 = sbr.rel (0) target = $region17
    $region16: #{tpu_custom_call.1} parent=1 // pred_region
      %51 = dma.done [#allocation3], 4096
    $region17: #{tpu_custom_call.1} parent=1 // pred_fallthru
      _
    // Predicated region
    $region18: #{tpu_custom_call.1} parent=1 // pred_check
      _
    $region19: #{tpu_custom_call.1} parent=1 // pred_check_branch
      %53 = sbr.rel (0) target = $region21
    $region20: #{tpu_custom_call.1} parent=1 // pred_region
      %55 = dma.done [#allocation6], 8192
    $region21: #{tpu_custom_call.1} parent=1 // pred_fallthru
      _
    // Predicated region
    $region22: #{tpu_custom_call.1} parent=1 // pred_check
      _
    $region23: #{tpu_custom_call.1} parent=1 // pred_check_branch
      %57 = sbr.rel (0) target = $region25
    $region24: #{tpu_custom_call.1} parent=1 // pred_region
      %59 = dma.done [#allocation6], 64
    $region25: #{tpu_custom_call.1} parent=1 // pred_fallthru
      _
    %v60 = vld [vmem:[#allocation7] sm:$0xf]
    %v61 = vld [vmem:[#allocation2] sm:$0xff]
    %v62 = vld [vmem:[#allocation2 + $0x8] sm:$0xff]
    %v63 = vld [vmem:[#allocation2 + $0x10] sm:$0xff]
    %v64 = vld [vmem:[#allocation2 + $0x18] sm:$0xff]
    %v65 = vld [vmem:[#allocation2 + $0x20] sm:$0xff]
    %v66 = vld [vmem:[#allocation2 + $0x28] sm:$0xff]
    %v67 = vld [vmem:[#allocation2 + $0x30] sm:$0xff]
    %v68 = vld [vmem:[#allocation2 + $0x38] sm:$0xff]
    %v69 = vld [vmem:[#allocation2 + $0x40] sm:$0xff]
    %v70 = vld [vmem:[#allocation2 + $0x48] sm:$0xff]
    %v71 = vld [vmem:[#allocation2 + $0x50] sm:$0xff]
    %v72 = vld [vmem:[#allocation2 + $0x58] sm:$0xff]
    %v73 = vld [vmem:[#allocation2 + $0x60] sm:$0xff]
    %v74 = vld [vmem:[#allocation2 + $0x68] sm:$0xff]
    %v75 = vld [vmem:[#allocation2 + $0x70] sm:$0xff]
    %v76 = vld [vmem:[#allocation2 + $0x78] sm:$0xff]
    %v77 = vld [vmem:[#allocation2 + $0x80] sm:$0xff]
    %v78 = vld [vmem:[#allocation2 + $0x88] sm:$0xff]
    %v79 = vld [vmem:[#allocation2 + $0x90] sm:$0xff]
    %v80 = vld [vmem:[#allocation2 + $0x98] sm:$0xff]
    %v81 = vld [vmem:[#allocation2 + $0xa0] sm:$0xff]
    %v82 = vld [vmem:[#allocation2 + $0xa8] sm:$0xff]
    %v83 = vld [vmem:[#allocation2 + $0xb0] sm:$0xff]
    %v84 = vld [vmem:[#allocation2 + $0xb8] sm:$0xff]
    %v85 = vld [vmem:[#allocation2 + $0xc0] sm:$0xff]
    %v86 = vld [vmem:[#allocation2 + $0xc8] sm:$0xff]
    %v87 = vld [vmem:[#allocation2 + $0xd0] sm:$0xff]
    %v88 = vld [vmem:[#allocation2 + $0xd8] sm:$0xff]
    %v89 = vld [vmem:[#allocation2 + $0xe0] sm:$0xff]
    %v90 = vld [vmem:[#allocation2 + $0xe8] sm:$0xff]
    %v91 = vld [vmem:[#allocation2 + $0xf0] sm:$0xff]
    %v92 = vld [vmem:[#allocation2 + $0xf8] sm:$0xff]
    %v93 = vld [vmem:[#allocation5] sm:$0xff]
    %v94 = vld [vmem:[#allocation5 + $0x8] sm:$0xff]
    %v95 = vld [vmem:[#allocation5 + $0x10] sm:$0xff]
    %v96 = vld [vmem:[#allocation5 + $0x18] sm:$0xff]
    %v97 = vld [vmem:[#allocation5 + $0x20] sm:$0xff]
    %v98 = vld [vmem:[#allocation5 + $0x28] sm:$0xff]
    %v99 = vld [vmem:[#allocation5 + $0x30] sm:$0xff]
    %v100 = vld [vmem:[#allocation5 + $0x38] sm:$0xff]
    %v101 = vld [vmem:[#allocation5 + $0x40] sm:$0xff]
    %v102 = vld [vmem:[#allocation5 + $0x48] sm:$0xff]
    %v103 = vld [vmem:[#allocation5 + $0x50] sm:$0xff]
    %v104 = vld [vmem:[#allocation5 + $0x58] sm:$0xff]
    %v105 = vld [vmem:[#allocation5 + $0x60] sm:$0xff]
    %v106 = vld [vmem:[#allocation5 + $0x68] sm:$0xff]
    %v107 = vld [vmem:[#allocation5 + $0x70] sm:$0xff]
    %v108 = vld [vmem:[#allocation5 + $0x78] sm:$0xff]
    %v109 = vperm.slane %v60, 0
    %110 = vmatpush.msra.mxu0 %v108
    %111 = vmatpush.msra.mxu0 %v107
    %112 = vmatpush.msra.mxu0 %v106
    %113 = vmatpush.msra.mxu0 %v105
    %114 = vmatpush.msra.mxu0 %v104
    %115 = vmatpush.msra.mxu0 %v103
    %116 = vmatpush.msra.mxu0 %v102
    %117 = vmatpush.msra.mxu0 %v101
    %118 = vmatpush.msra.mxu0 %v100
    %119 = vmatpush.msra.mxu0 %v99
    %120 = vmatpush.msra.mxu0 %v98
    %121 = vmatpush.msra.mxu0 %v97
    %122 = vmatpush.msra.mxu0 %v96
    %123 = vmatpush.msra.mxu0 %v95
    %124 = vmatpush.msra.mxu0 %v94
    %125 = vmatpush.msra.mxu0 %v93
    %126 = vmatmul.f32.gmra.mxu0 %v61
    %v127 = vpop.f32.mrf.mxu0
    %v128 = vadd.f32 %v109, %v127
    %129 = vmatmul.f32.gmra.mxu0 %v62
    %v130 = vpop.f32.mrf.mxu0
    %v131 = vadd.f32 %v109, %v130
    %132 = vmatmul.f32.gmra.mxu0 %v63
    %v133 = vpop.f32.mrf.mxu0
    %v134 = vadd.f32 %v109, %v133
    %135 = vmatmul.f32.gmra.mxu0 %v64
    %v136 = vpop.f32.mrf.mxu0
    %v137 = vadd.f32 %v109, %v136
    %138 = vmatmul.f32.gmra.mxu0 %v65
    %v139 = vpop.f32.mrf.mxu0
    %v140 = vadd.f32 %v109, %v139
    %141 = vmatmul.f32.gmra.mxu0 %v66
    %v142 = vpop.f32.mrf.mxu0
    %v143 = vadd.f32 %v109, %v142
    %144 = vmatmul.f32.gmra.mxu0 %v67
    %v145 = vpop.f32.mrf.mxu0
    %v146 = vadd.f32 %v109, %v145
    %147 = vmatmul.f32.gmra.mxu0 %v68
    %v148 = vpop.f32.mrf.mxu0
    %v149 = vadd.f32 %v109, %v148
    %150 = vmatmul.f32.gmra.mxu0 %v69
    %v151 = vpop.f32.mrf.mxu0
    %v152 = vadd.f32 %v109, %v151
    %153 = vmatmul.f32.gmra.mxu0 %v70
    %v154 = vpop.f32.mrf.mxu0
    %v155 = vadd.f32 %v109, %v154
    %156 = vmatmul.f32.gmra.mxu0 %v71
    %v157 = vpop.f32.mrf.mxu0
    %v158 = vadd.f32 %v109, %v157
    %159 = vmatmul.f32.gmra.mxu0 %v72
    %v160 = vpop.f32.mrf.mxu0
    %v161 = vadd.f32 %v109, %v160
    %162 = vmatmul.f32.gmra.mxu0 %v73
    %v163 = vpop.f32.mrf.mxu0
    %v164 = vadd.f32 %v109, %v163
    %165 = vmatmul.f32.gmra.mxu0 %v74
    %v166 = vpop.f32.mrf.mxu0
    %v167 = vadd.f32 %v109, %v166
    %168 = vmatmul.f32.gmra.mxu0 %v75
    %v169 = vpop.f32.mrf.mxu0
    %v170 = vadd.f32 %v109, %v169
    %171 = vmatmul.f32.gmra.mxu0 %v76
    %v172 = vpop.f32.mrf.mxu0
    %v173 = vadd.f32 %v109, %v172
    %174 = vmatmul.f32.gmra.mxu0 %v77
    %v175 = vpop.f32.mrf.mxu0
    %v176 = vadd.f32 %v109, %v175
    %177 = vmatmul.f32.gmra.mxu0 %v78
    %v178 = vpop.f32.mrf.mxu0
    %v179 = vadd.f32 %v109, %v178
    %180 = vmatmul.f32.gmra.mxu0 %v79
    %v181 = vpop.f32.mrf.mxu0
    %v182 = vadd.f32 %v109, %v181
    %183 = vmatmul.f32.gmra.mxu0 %v80
    %v184 = vpop.f32.mrf.mxu0
    %v185 = vadd.f32 %v109, %v184
    %186 = vmatmul.f32.gmra.mxu0 %v81
    %v187 = vpop.f32.mrf.mxu0
    %v188 = vadd.f32 %v109, %v187
    %189 = vmatmul.f32.gmra.mxu0 %v82
    %v190 = vpop.f32.mrf.mxu0
    %v191 = vadd.f32 %v109, %v190
    %192 = vmatmul.f32.gmra.mxu0 %v83
    %v193 = vpop.f32.mrf.mxu0
    %v194 = vadd.f32 %v109, %v193
    %195 = vmatmul.f32.gmra.mxu0 %v84
    %v196 = vpop.f32.mrf.mxu0
    %v197 = vadd.f32 %v109, %v196
    %198 = vmatmul.f32.gmra.mxu0 %v85
    %v199 = vpop.f32.mrf.mxu0
    %v200 = vadd.f32 %v109, %v199
    %201 = vmatmul.f32.gmra.mxu0 %v86
    %v202 = vpop.f32.mrf.mxu0
    %v203 = vadd.f32 %v109, %v202
    %204 = vmatmul.f32.gmra.mxu0 %v87
    %v205 = vpop.f32.mrf.mxu0
    %v206 = vadd.f32 %v109, %v205
    %207 = vmatmul.f32.gmra.mxu0 %v88
    %v208 = vpop.f32.mrf.mxu0
    %v209 = vadd.f32 %v109, %v208
    %210 = vmatmul.f32.gmra.mxu0 %v89
    %v211 = vpop.f32.mrf.mxu0
    %v212 = vadd.f32 %v109, %v211
    %213 = vmatmul.f32.gmra.mxu0 %v90
    %v214 = vpop.f32.mrf.mxu0
    %v215 = vadd.f32 %v109, %v214
    %216 = vmatmul.f32.gmra.mxu0 %v91
    %v217 = vpop.f32.mrf.mxu0
    %v218 = vadd.f32 %v109, %v217
    %219 = vmatmul.f32.gmra.mxu0 %v92
    %v220 = vpop.f32.mrf.mxu0
    %v221 = vadd.f32 %v109, %v220
    %222 = vdwg.mxu0
    %v223 = vmax.f32 %v128, 0.0
    %v224 = vmax.f32 %v131, 0.0
    %v225 = vmax.f32 %v134, 0.0
    %v226 = vmax.f32 %v137, 0.0
    %v227 = vmax.f32 %v140, 0.0
    %v228 = vmax.f32 %v143, 0.0
    %v229 = vmax.f32 %v146, 0.0
    %v230 = vmax.f32 %v149, 0.0
    %v231 = vmax.f32 %v152, 0.0
    %v232 = vmax.f32 %v155, 0.0
    %v233 = vmax.f32 %v158, 0.0
    %v234 = vmax.f32 %v161, 0.0
    %v235 = vmax.f32 %v164, 0.0
    %v236 = vmax.f32 %v167, 0.0
    %v237 = vmax.f32 %v170, 0.0
    %v238 = vmax.f32 %v173, 0.0
    %v239 = vmax.f32 %v176, 0.0
    %v240 = vmax.f32 %v179, 0.0
    %v241 = vmax.f32 %v182, 0.0
    %v242 = vmax.f32 %v185, 0.0
    %v243 = vmax.f32 %v188, 0.0
    %v244 = vmax.f32 %v191, 0.0
    %v245 = vmax.f32 %v194, 0.0
    %v246 = vmax.f32 %v197, 0.0
    %v247 = vmax.f32 %v200, 0.0
    %v248 = vmax.f32 %v203, 0.0
    %v249 = vmax.f32 %v206, 0.0
    %v250 = vmax.f32 %v209, 0.0
    %v251 = vmax.f32 %v212, 0.0
    %v252 = vmax.f32 %v215, 0.0
    %v253 = vmax.f32 %v218, 0.0
    %v254 = vmax.f32 %v221, 0.0
    %s255 = scalar_lea.vmem [#allocation5], 128
    %v256 = vld [vmem:[%s255] sm:$0xff]
    %v257 = vld [vmem:[%s255 + $0x8] sm:$0xff]
    %v258 = vld [vmem:[%s255 + $0x10] sm:$0xff]
    %v259 = vld [vmem:[%s255 + $0x18] sm:$0xff]
    %v260 = vld [vmem:[%s255 + $0x20] sm:$0xff]
    %v261 = vld [vmem:[%s255 + $0x28] sm:$0xff]
    %v262 = vld [vmem:[%s255 + $0x30] sm:$0xff]
    %v263 = vld [vmem:[%s255 + $0x38] sm:$0xff]
    %v264 = vld [vmem:[%s255 + $0x40] sm:$0xff]
    %v265 = vld [vmem:[%s255 + $0x48] sm:$0xff]
    %v266 = vld [vmem:[%s255 + $0x50] sm:$0xff]
    %v267 = vld [vmem:[%s255 + $0x58] sm:$0xff]
    %v268 = vld [vmem:[%s255 + $0x60] sm:$0xff]
    %v269 = vld [vmem:[%s255 + $0x68] sm:$0xff]
    %v270 = vld [vmem:[%s255 + $0x70] sm:$0xff]
    %v271 = vld [vmem:[%s255 + $0x78] sm:$0xff]
    %v272 = vperm.slane %v60, 1
    %273 = vmatpush.msra.mxu0 %v271
    %274 = vmatpush.msra.mxu0 %v270
    %275 = vmatpush.msra.mxu0 %v269
    %276 = vmatpush.msra.mxu0 %v268
    %277 = vmatpush.msra.mxu0 %v267
    %278 = vmatpush.msra.mxu0 %v266
    %279 = vmatpush.msra.mxu0 %v265
    %280 = vmatpush.msra.mxu0 %v264
    %281 = vmatpush.msra.mxu0 %v263
    %282 = vmatpush.msra.mxu0 %v262
    %283 = vmatpush.msra.mxu0 %v261
    %284 = vmatpush.msra.mxu0 %v260
    %285 = vmatpush.msra.mxu0 %v259
    %286 = vmatpush.msra.mxu0 %v258
    %287 = vmatpush.msra.mxu0 %v257
    %288 = vmatpush.msra.mxu0 %v256
    %289 = vmatmul.f32.gmra.mxu0 %v223
    %v290 = vpop.f32.mrf.mxu0
    %v291 = vadd.f32 %v272, %v290
    %292 = vmatmul.f32.gmra.mxu0 %v224
    %v293 = vpop.f32.mrf.mxu0
    %v294 = vadd.f32 %v272, %v293
    %295 = vmatmul.f32.gmra.mxu0 %v225
    %v296 = vpop.f32.mrf.mxu0
    %v297 = vadd.f32 %v272, %v296
    %298 = vmatmul.f32.gmra.mxu0 %v226
    %v299 = vpop.f32.mrf.mxu0
    %v300 = vadd.f32 %v272, %v299
    %301 = vmatmul.f32.gmra.mxu0 %v227
    %v302 = vpop.f32.mrf.mxu0
    %v303 = vadd.f32 %v272, %v302
    %304 = vmatmul.f32.gmra.mxu0 %v228
    %v305 = vpop.f32.mrf.mxu0
    %v306 = vadd.f32 %v272, %v305
    %307 = vmatmul.f32.gmra.mxu0 %v229
    %v308 = vpop.f32.mrf.mxu0
    %v309 = vadd.f32 %v272, %v308
    %310 = vmatmul.f32.gmra.mxu0 %v230
    %v311 = vpop.f32.mrf.mxu0
    %v312 = vadd.f32 %v272, %v311
    %313 = vmatmul.f32.gmra.mxu0 %v231
    %v314 = vpop.f32.mrf.mxu0
    %v315 = vadd.f32 %v272, %v314
    %316 = vmatmul.f32.gmra.mxu0 %v232
    %v317 = vpop.f32.mrf.mxu0
    %v318 = vadd.f32 %v272, %v317
    %319 = vmatmul.f32.gmra.mxu0 %v233
    %v320 = vpop.f32.mrf.mxu0
    %v321 = vadd.f32 %v272, %v320
    %322 = vmatmul.f32.gmra.mxu0 %v234
    %v323 = vpop.f32.mrf.mxu0
    %v324 = vadd.f32 %v272, %v323
    %325 = vmatmul.f32.gmra.mxu0 %v235
    %v326 = vpop.f32.mrf.mxu0
    %v327 = vadd.f32 %v272, %v326
    %328 = vmatmul.f32.gmra.mxu0 %v236
    %v329 = vpop.f32.mrf.mxu0
    %v330 = vadd.f32 %v272, %v329
    %331 = vmatmul.f32.gmra.mxu0 %v237
    %v332 = vpop.f32.mrf.mxu0
    %v333 = vadd.f32 %v272, %v332
    %334 = vmatmul.f32.gmra.mxu0 %v238
    %v335 = vpop.f32.mrf.mxu0
    %v336 = vadd.f32 %v272, %v335
    %337 = vmatmul.f32.gmra.mxu0 %v239
    %v338 = vpop.f32.mrf.mxu0
    %v339 = vadd.f32 %v272, %v338
    %340 = vmatmul.f32.gmra.mxu0 %v240
    %v341 = vpop.f32.mrf.mxu0
    %v342 = vadd.f32 %v272, %v341
    %343 = vmatmul.f32.gmra.mxu0 %v241
    %v344 = vpop.f32.mrf.mxu0
    %v345 = vadd.f32 %v272, %v344
    %346 = vmatmul.f32.gmra.mxu0 %v242
    %v347 = vpop.f32.mrf.mxu0
    %v348 = vadd.f32 %v272, %v347
    %349 = vmatmul.f32.gmra.mxu0 %v243
    %v350 = vpop.f32.mrf.mxu0
    %v351 = vadd.f32 %v272, %v350
    %352 = vmatmul.f32.gmra.mxu0 %v244
    %v353 = vpop.f32.mrf.mxu0
    %v354 = vadd.f32 %v272, %v353
    %355 = vmatmul.f32.gmra.mxu0 %v245
    %v356 = vpop.f32.mrf.mxu0
    %v357 = vadd.f32 %v272, %v356
    %358 = vmatmul.f32.gmra.mxu0 %v246
    %v359 = vpop.f32.mrf.mxu0
    %v360 = vadd.f32 %v272, %v359
    %361 = vmatmul.f32.gmra.mxu0 %v247
    %v362 = vpop.f32.mrf.mxu0
    %v363 = vadd.f32 %v272, %v362
    %364 = vmatmul.f32.gmra.mxu0 %v248
    %v365 = vpop.f32.mrf.mxu0
    %v366 = vadd.f32 %v272, %v365
    %367 = vmatmul.f32.gmra.mxu0 %v249
    %v368 = vpop.f32.mrf.mxu0
    %v369 = vadd.f32 %v272, %v368
    %370 = vmatmul.f32.gmra.mxu0 %v250
    %v371 = vpop.f32.mrf.mxu0
    %v372 = vadd.f32 %v272, %v371
    %373 = vmatmul.f32.gmra.mxu0 %v251
    %v374 = vpop.f32.mrf.mxu0
    %v375 = vadd.f32 %v272, %v374
    %376 = vmatmul.f32.gmra.mxu0 %v252
    %v377 = vpop.f32.mrf.mxu0
    %v378 = vadd.f32 %v272, %v377
    %379 = vmatmul.f32.gmra.mxu0 %v253
    %v380 = vpop.f32.mrf.mxu0
    %v381 = vadd.f32 %v272, %v380
    %382 = vmatmul.f32.gmra.mxu0 %v254
    %v383 = vpop.f32.mrf.mxu0
    %v384 = vadd.f32 %v272, %v383
    %385 = vdwg.mxu0
    %v386 = vmax.f32 %v291, 0.0
    %v387 = vmax.f32 %v294, 0.0
    %v388 = vmax.f32 %v297, 0.0
    %v389 = vmax.f32 %v300, 0.0
    %v390 = vmax.f32 %v303, 0.0
    %v391 = vmax.f32 %v306, 0.0
    %v392 = vmax.f32 %v309, 0.0
    %v393 = vmax.f32 %v312, 0.0
    %v394 = vmax.f32 %v315, 0.0
    %v395 = vmax.f32 %v318, 0.0
    %v396 = vmax.f32 %v321, 0.0
    %v397 = vmax.f32 %v324, 0.0
    %v398 = vmax.f32 %v327, 0.0
    %v399 = vmax.f32 %v330, 0.0
    %v400 = vmax.f32 %v333, 0.0
    %v401 = vmax.f32 %v336, 0.0
    %v402 = vmax.f32 %v339, 0.0
    %v403 = vmax.f32 %v342, 0.0
    %v404 = vmax.f32 %v345, 0.0
    %v405 = vmax.f32 %v348, 0.0
    %v406 = vmax.f32 %v351, 0.0
    %v407 = vmax.f32 %v354, 0.0
    %v408 = vmax.f32 %v357, 0.0
    %v409 = vmax.f32 %v360, 0.0
    %v410 = vmax.f32 %v363, 0.0
    %v411 = vmax.f32 %v366, 0.0
    %v412 = vmax.f32 %v369, 0.0
    %v413 = vmax.f32 %v372, 0.0
    %v414 = vmax.f32 %v375, 0.0
    %v415 = vmax.f32 %v378, 0.0
    %v416 = vmax.f32 %v381, 0.0
    %v417 = vmax.f32 %v384, 0.0
    %s418 = scalar_lea.vmem [#allocation5], 256
    %v419 = vld [vmem:[%s418] sm:$0xff]
    %v420 = vld [vmem:[%s418 + $0x8] sm:$0xff]
    %v421 = vld [vmem:[%s418 + $0x10] sm:$0xff]
    %v422 = vld [vmem:[%s418 + $0x18] sm:$0xff]
    %v423 = vld [vmem:[%s418 + $0x20] sm:$0xff]
    %v424 = vld [vmem:[%s418 + $0x28] sm:$0xff]
    %v425 = vld [vmem:[%s418 + $0x30] sm:$0xff]
    %v426 = vld [vmem:[%s418 + $0x38] sm:$0xff]
    %v427 = vld [vmem:[%s418 + $0x40] sm:$0xff]
    %v428 = vld [vmem:[%s418 + $0x48] sm:$0xff]
    %v429 = vld [vmem:[%s418 + $0x50] sm:$0xff]
    %v430 = vld [vmem:[%s418 + $0x58] sm:$0xff]
    %v431 = vld [vmem:[%s418 + $0x60] sm:$0xff]
    %v432 = vld [vmem:[%s418 + $0x68] sm:$0xff]
    %v433 = vld [vmem:[%s418 + $0x70] sm:$0xff]
    %v434 = vld [vmem:[%s418 + $0x78] sm:$0xff]
    %v435 = vperm.slane %v60, 2
    %436 = vmatpush.msra.mxu0 %v434
    %437 = vmatpush.msra.mxu0 %v433
    %438 = vmatpush.msra.mxu0 %v432
    %439 = vmatpush.msra.mxu0 %v431
    %440 = vmatpush.msra.mxu0 %v430
    %441 = vmatpush.msra.mxu0 %v429
    %442 = vmatpush.msra.mxu0 %v428
    %443 = vmatpush.msra.mxu0 %v427
    %444 = vmatpush.msra.mxu0 %v426
    %445 = vmatpush.msra.mxu0 %v425
    %446 = vmatpush.msra.mxu0 %v424
    %447 = vmatpush.msra.mxu0 %v423
    %448 = vmatpush.msra.mxu0 %v422
    %449 = vmatpush.msra.mxu0 %v421
    %450 = vmatpush.msra.mxu0 %v420
    %451 = vmatpush.msra.mxu0 %v419
    %452 = vmatmul.f32.gmra.mxu0 %v386
    %v453 = vpop.f32.mrf.mxu0
    %v454 = vadd.f32 %v435, %v453
    %455 = vmatmul.f32.gmra.mxu0 %v387
    %v456 = vpop.f32.mrf.mxu0
    %v457 = vadd.f32 %v435, %v456
    %458 = vmatmul.f32.gmra.mxu0 %v388
    %v459 = vpop.f32.mrf.mxu0
    %v460 = vadd.f32 %v435, %v459
    %461 = vmatmul.f32.gmra.mxu0 %v389
    %v462 = vpop.f32.mrf.mxu0
    %v463 = vadd.f32 %v435, %v462
    %464 = vmatmul.f32.gmra.mxu0 %v390
    %v465 = vpop.f32.mrf.mxu0
    %v466 = vadd.f32 %v435, %v465
    %467 = vmatmul.f32.gmra.mxu0 %v391
    %v468 = vpop.f32.mrf.mxu0
    %v469 = vadd.f32 %v435, %v468
    %470 = vmatmul.f32.gmra.mxu0 %v392
    %v471 = vpop.f32.mrf.mxu0
    %v472 = vadd.f32 %v435, %v471
    %473 = vmatmul.f32.gmra.mxu0 %v393
    %v474 = vpop.f32.mrf.mxu0
    %v475 = vadd.f32 %v435, %v474
    %476 = vmatmul.f32.gmra.mxu0 %v394
    %v477 = vpop.f32.mrf.mxu0
    %v478 = vadd.f32 %v435, %v477
    %479 = vmatmul.f32.gmra.mxu0 %v395
    %v480 = vpop.f32.mrf.mxu0
    %v481 = vadd.f32 %v435, %v480
    %482 = vmatmul.f32.gmra.mxu0 %v396
    %v483 = vpop.f32.mrf.mxu0
    %v484 = vadd.f32 %v435, %v483
    %485 = vmatmul.f32.gmra.mxu0 %v397
    %v486 = vpop.f32.mrf.mxu0
    %v487 = vadd.f32 %v435, %v486
    %488 = vmatmul.f32.gmra.mxu0 %v398
    %v489 = vpop.f32.mrf.mxu0
    %v490 = vadd.f32 %v435, %v489
    %491 = vmatmul.f32.gmra.mxu0 %v399
    %v492 = vpop.f32.mrf.mxu0
    %v493 = vadd.f32 %v435, %v492
    %494 = vmatmul.f32.gmra.mxu0 %v400
    %v495 = vpop.f32.mrf.mxu0
    %v496 = vadd.f32 %v435, %v495
    %497 = vmatmul.f32.gmra.mxu0 %v401
    %v498 = vpop.f32.mrf.mxu0
    %v499 = vadd.f32 %v435, %v498
    %500 = vmatmul.f32.gmra.mxu0 %v402
    %v501 = vpop.f32.mrf.mxu0
    %v502 = vadd.f32 %v435, %v501
    %503 = vmatmul.f32.gmra.mxu0 %v403
    %v504 = vpop.f32.mrf.mxu0
    %v505 = vadd.f32 %v435, %v504
    %506 = vmatmul.f32.gmra.mxu0 %v404
    %v507 = vpop.f32.mrf.mxu0
    %v508 = vadd.f32 %v435, %v507
    %509 = vmatmul.f32.gmra.mxu0 %v405
    %v510 = vpop.f32.mrf.mxu0
    %v511 = vadd.f32 %v435, %v510
    %512 = vmatmul.f32.gmra.mxu0 %v406
    %v513 = vpop.f32.mrf.mxu0
    %v514 = vadd.f32 %v435, %v513
    %515 = vmatmul.f32.gmra.mxu0 %v407
    %v516 = vpop.f32.mrf.mxu0
    %v517 = vadd.f32 %v435, %v516
    %518 = vmatmul.f32.gmra.mxu0 %v408
    %v519 = vpop.f32.mrf.mxu0
    %v520 = vadd.f32 %v435, %v519
    %521 = vmatmul.f32.gmra.mxu0 %v409
    %v522 = vpop.f32.mrf.mxu0
    %v523 = vadd.f32 %v435, %v522
    %524 = vmatmul.f32.gmra.mxu0 %v410
    %v525 = vpop.f32.mrf.mxu0
    %v526 = vadd.f32 %v435, %v525
    %527 = vmatmul.f32.gmra.mxu0 %v411
    %v528 = vpop.f32.mrf.mxu0
    %v529 = vadd.f32 %v435, %v528
    %530 = vmatmul.f32.gmra.mxu0 %v412
    %v531 = vpop.f32.mrf.mxu0
    %v532 = vadd.f32 %v435, %v531
    %533 = vmatmul.f32.gmra.mxu0 %v413
    %v534 = vpop.f32.mrf.mxu0
    %v535 = vadd.f32 %v435, %v534
    %536 = vmatmul.f32.gmra.mxu0 %v414
    %v537 = vpop.f32.mrf.mxu0
    %v538 = vadd.f32 %v435, %v537
    %539 = vmatmul.f32.gmra.mxu0 %v415
    %v540 = vpop.f32.mrf.mxu0
    %v541 = vadd.f32 %v435, %v540
    %542 = vmatmul.f32.gmra.mxu0 %v416
    %v543 = vpop.f32.mrf.mxu0
    %v544 = vadd.f32 %v435, %v543
    %545 = vmatmul.f32.gmra.mxu0 %v417
    %v546 = vpop.f32.mrf.mxu0
    %v547 = vadd.f32 %v435, %v546
    %548 = vdwg.mxu0
    %v549 = vmax.f32 %v454, 0.0
    %v550 = vmax.f32 %v457, 0.0
    %v551 = vmax.f32 %v460, 0.0
    %v552 = vmax.f32 %v463, 0.0
    %v553 = vmax.f32 %v466, 0.0
    %v554 = vmax.f32 %v469, 0.0
    %v555 = vmax.f32 %v472, 0.0
    %v556 = vmax.f32 %v475, 0.0
    %v557 = vmax.f32 %v478, 0.0
    %v558 = vmax.f32 %v481, 0.0
    %v559 = vmax.f32 %v484, 0.0
    %v560 = vmax.f32 %v487, 0.0
    %v561 = vmax.f32 %v490, 0.0
    %v562 = vmax.f32 %v493, 0.0
    %v563 = vmax.f32 %v496, 0.0
    %v564 = vmax.f32 %v499, 0.0
    %v565 = vmax.f32 %v502, 0.0
    %v566 = vmax.f32 %v505, 0.0
    %v567 = vmax.f32 %v508, 0.0
    %v568 = vmax.f32 %v511, 0.0
    %v569 = vmax.f32 %v514, 0.0
    %v570 = vmax.f32 %v517, 0.0
    %v571 = vmax.f32 %v520, 0.0
    %v572 = vmax.f32 %v523, 0.0
    %v573 = vmax.f32 %v526, 0.0
    %v574 = vmax.f32 %v529, 0.0
    %v575 = vmax.f32 %v532, 0.0
    %v576 = vmax.f32 %v535, 0.0
    %v577 = vmax.f32 %v538, 0.0
    %v578 = vmax.f32 %v541, 0.0
    %v579 = vmax.f32 %v544, 0.0
    %v580 = vmax.f32 %v547, 0.0
    %s581 = scalar_lea.vmem [#allocation5], 384
    %v582 = vld [vmem:[%s581] sm:$0xff]
    %v583 = vld [vmem:[%s581 + $0x8] sm:$0xff]
    %v584 = vld [vmem:[%s581 + $0x10] sm:$0xff]
    %v585 = vld [vmem:[%s581 + $0x18] sm:$0xff]
    %v586 = vld [vmem:[%s581 + $0x20] sm:$0xff]
    %v587 = vld [vmem:[%s581 + $0x28] sm:$0xff]
    %v588 = vld [vmem:[%s581 + $0x30] sm:$0xff]
    %v589 = vld [vmem:[%s581 + $0x38] sm:$0xff]
    %v590 = vld [vmem:[%s581 + $0x40] sm:$0xff]
    %v591 = vld [vmem:[%s581 + $0x48] sm:$0xff]
    %v592 = vld [vmem:[%s581 + $0x50] sm:$0xff]
    %v593 = vld [vmem:[%s581 + $0x58] sm:$0xff]
    %v594 = vld [vmem:[%s581 + $0x60] sm:$0xff]
    %v595 = vld [vmem:[%s581 + $0x68] sm:$0xff]
    %v596 = vld [vmem:[%s581 + $0x70] sm:$0xff]
    %v597 = vld [vmem:[%s581 + $0x78] sm:$0xff]
    %v598 = vperm.slane %v60, 3
    %599 = vmatpush.msra.mxu0 %v597
    %600 = vmatpush.msra.mxu0 %v596
    %601 = vmatpush.msra.mxu0 %v595
    %602 = vmatpush.msra.mxu0 %v594
    %603 = vmatpush.msra.mxu0 %v593
    %604 = vmatpush.msra.mxu0 %v592
    %605 = vmatpush.msra.mxu0 %v591
    %606 = vmatpush.msra.mxu0 %v590
    %607 = vmatpush.msra.mxu0 %v589
    %608 = vmatpush.msra.mxu0 %v588
    %609 = vmatpush.msra.mxu0 %v587
    %610 = vmatpush.msra.mxu0 %v586
    %611 = vmatpush.msra.mxu0 %v585
    %612 = vmatpush.msra.mxu0 %v584
    %613 = vmatpush.msra.mxu0 %v583
    %614 = vmatpush.msra.mxu0 %v582
    %615 = vmatmul.f32.gmra.mxu0 %v549
    %v616 = vpop.f32.mrf.mxu0
    %v617 = vadd.f32 %v598, %v616
    %618 = vmatmul.f32.gmra.mxu0 %v550
    %v619 = vpop.f32.mrf.mxu0
    %v620 = vadd.f32 %v598, %v619
    %621 = vmatmul.f32.gmra.mxu0 %v551
    %v622 = vpop.f32.mrf.mxu0
    %v623 = vadd.f32 %v598, %v622
    %624 = vmatmul.f32.gmra.mxu0 %v552
    %v625 = vpop.f32.mrf.mxu0
    %v626 = vadd.f32 %v598, %v625
    %627 = vmatmul.f32.gmra.mxu0 %v553
    %v628 = vpop.f32.mrf.mxu0
    %v629 = vadd.f32 %v598, %v628
    %630 = vmatmul.f32.gmra.mxu0 %v554
    %v631 = vpop.f32.mrf.mxu0
    %v632 = vadd.f32 %v598, %v631
    %633 = vmatmul.f32.gmra.mxu0 %v555
    %v634 = vpop.f32.mrf.mxu0
    %v635 = vadd.f32 %v598, %v634
    %636 = vmatmul.f32.gmra.mxu0 %v556
    %v637 = vpop.f32.mrf.mxu0
    %v638 = vadd.f32 %v598, %v637
    %639 = vmatmul.f32.gmra.mxu0 %v557
    %v640 = vpop.f32.mrf.mxu0
    %v641 = vadd.f32 %v598, %v640
    %642 = vmatmul.f32.gmra.mxu0 %v558
    %v643 = vpop.f32.mrf.mxu0
    %v644 = vadd.f32 %v598, %v643
    %645 = vmatmul.f32.gmra.mxu0 %v559
    %v646 = vpop.f32.mrf.mxu0
    %v647 = vadd.f32 %v598, %v646
    %648 = vmatmul.f32.gmra.mxu0 %v560
    %v649 = vpop.f32.mrf.mxu0
    %v650 = vadd.f32 %v598, %v649
    %651 = vmatmul.f32.gmra.mxu0 %v561
    %v652 = vpop.f32.mrf.mxu0
    %v653 = vadd.f32 %v598, %v652
    %654 = vmatmul.f32.gmra.mxu0 %v562
    %v655 = vpop.f32.mrf.mxu0
    %v656 = vadd.f32 %v598, %v655
    %657 = vmatmul.f32.gmra.mxu0 %v563
    %v658 = vpop.f32.mrf.mxu0
    %v659 = vadd.f32 %v598, %v658
    %660 = vmatmul.f32.gmra.mxu0 %v564
    %v661 = vpop.f32.mrf.mxu0
    %v662 = vadd.f32 %v598, %v661
    %663 = vmatmul.f32.gmra.mxu0 %v565
    %v664 = vpop.f32.mrf.mxu0
    %v665 = vadd.f32 %v598, %v664
    %666 = vmatmul.f32.gmra.mxu0 %v566
    %v667 = vpop.f32.mrf.mxu0
    %v668 = vadd.f32 %v598, %v667
    %669 = vmatmul.f32.gmra.mxu0 %v567
    %v670 = vpop.f32.mrf.mxu0
    %v671 = vadd.f32 %v598, %v670
    %672 = vmatmul.f32.gmra.mxu0 %v568
    %v673 = vpop.f32.mrf.mxu0
    %v674 = vadd.f32 %v598, %v673
    %675 = vmatmul.f32.gmra.mxu0 %v569
    %v676 = vpop.f32.mrf.mxu0
    %v677 = vadd.f32 %v598, %v676
    %678 = vmatmul.f32.gmra.mxu0 %v570
    %v679 = vpop.f32.mrf.mxu0
    %v680 = vadd.f32 %v598, %v679
    %681 = vmatmul.f32.gmra.mxu0 %v571
    %v682 = vpop.f32.mrf.mxu0
    %v683 = vadd.f32 %v598, %v682
    %684 = vmatmul.f32.gmra.mxu0 %v572
    %v685 = vpop.f32.mrf.mxu0
    %v686 = vadd.f32 %v598, %v685
    %687 = vmatmul.f32.gmra.mxu0 %v573
    %v688 = vpop.f32.mrf.mxu0
    %v689 = vadd.f32 %v598, %v688
    %690 = vmatmul.f32.gmra.mxu0 %v574
    %v691 = vpop.f32.mrf.mxu0
    %v692 = vadd.f32 %v598, %v691
    %693 = vmatmul.f32.gmra.mxu0 %v575
    %v694 = vpop.f32.mrf.mxu0
    %v695 = vadd.f32 %v598, %v694
    %696 = vmatmul.f32.gmra.mxu0 %v576
    %v697 = vpop.f32.mrf.mxu0
    %v698 = vadd.f32 %v598, %v697
    %699 = vmatmul.f32.gmra.mxu0 %v577
    %v700 = vpop.f32.mrf.mxu0
    %v701 = vadd.f32 %v598, %v700
    %702 = vmatmul.f32.gmra.mxu0 %v578
    %v703 = vpop.f32.mrf.mxu0
    %v704 = vadd.f32 %v598, %v703
    %705 = vmatmul.f32.gmra.mxu0 %v579
    %v706 = vpop.f32.mrf.mxu0
    %v707 = vadd.f32 %v598, %v706
    %708 = vmatmul.f32.gmra.mxu0 %v580
    %v709 = vpop.f32.mrf.mxu0
    %v710 = vadd.f32 %v598, %v709
    %711 = vdwg.mxu0
    %712 = vst [vmem:[#allocation8] sm:$0xff] %v617
    %713 = vst [vmem:[#allocation8 + $0x8] sm:$0xff] %v620
    %714 = vst [vmem:[#allocation8 + $0x10] sm:$0xff] %v623
    %715 = vst [vmem:[#allocation8 + $0x18] sm:$0xff] %v626
    %716 = vst [vmem:[#allocation8 + $0x20] sm:$0xff] %v629
    %717 = vst [vmem:[#allocation8 + $0x28] sm:$0xff] %v632
    %718 = vst [vmem:[#allocation8 + $0x30] sm:$0xff] %v635
    %719 = vst [vmem:[#allocation8 + $0x38] sm:$0xff] %v638
    %720 = vst [vmem:[#allocation8 + $0x40] sm:$0xff] %v641
    %721 = vst [vmem:[#allocation8 + $0x48] sm:$0xff] %v644
    %722 = vst [vmem:[#allocation8 + $0x50] sm:$0xff] %v647
    %723 = vst [vmem:[#allocation8 + $0x58] sm:$0xff] %v650
    %724 = vst [vmem:[#allocation8 + $0x60] sm:$0xff] %v653
    %725 = vst [vmem:[#allocation8 + $0x68] sm:$0xff] %v656
    %726 = vst [vmem:[#allocation8 + $0x70] sm:$0xff] %v659
    %727 = vst [vmem:[#allocation8 + $0x78] sm:$0xff] %v662
    %728 = vst [vmem:[#allocation8 + $0x80] sm:$0xff] %v665
    %729 = vst [vmem:[#allocation8 + $0x88] sm:$0xff] %v668
    %730 = vst [vmem:[#allocation8 + $0x90] sm:$0xff] %v671
    %731 = vst [vmem:[#allocation8 + $0x98] sm:$0xff] %v674
    %732 = vst [vmem:[#allocation8 + $0xa0] sm:$0xff] %v677
    %733 = vst [vmem:[#allocation8 + $0xa8] sm:$0xff] %v680
    %734 = vst [vmem:[#allocation8 + $0xb0] sm:$0xff] %v683
    %735 = vst [vmem:[#allocation8 + $0xb8] sm:$0xff] %v686
    %736 = vst [vmem:[#allocation8 + $0xc0] sm:$0xff] %v689
    %737 = vst [vmem:[#allocation8 + $0xc8] sm:$0xff] %v692
    %738 = vst [vmem:[#allocation8 + $0xd0] sm:$0xff] %v695
    %739 = vst [vmem:[#allocation8 + $0xd8] sm:$0xff] %v698
    %740 = vst [vmem:[#allocation8 + $0xe0] sm:$0xff] %v701
    %741 = vst [vmem:[#allocation8 + $0xe8] sm:$0xff] %v704
    %742 = vst [vmem:[#allocation8 + $0xf0] sm:$0xff] %v707
    %743 = vst [vmem:[#allocation8 + $0xf8] sm:$0xff] %v710
    // Predicated region
    $region26: #{tpu_custom_call.1} parent=1 // pred_check
      _
    $region27: #{tpu_custom_call.1} parent=1 // pred_check_branch
      %745 = sbr.rel (0) target = $region29
    $region28: #{tpu_custom_call.1} parent=1 // pred_region
      %747 = vsyncadd [#allocation4], 0
      %s748 = sshll.u32 [#allocation8], 4
      %s749 = int_to_ptr.vmem [resolvable:$true] %s748
      %s750 = sshll.u32 %s3, 4
      %s751 = int_to_ptr.hbm [resolvable:$true] %s750
      %756 = dma.vmem_to_hbm [thread:$0]  %s749, 4096, %s751, [#allocation4], 128, 128, 8
    $region29: #{tpu_custom_call.1} parent=1 // pred_fallthru
      _
    // Predicated region
    $region30: #{tpu_custom_call.1} parent=1 // pred_check
      _
    $region31: #{tpu_custom_call.1} parent=1 // pred_check_branch
      %758 = sbr.rel (0) target = $region33
    $region32: #{tpu_custom_call.1} parent=1 // pred_region
      %760 = dma.done [#allocation4], 4096
    $region33: #{tpu_custom_call.1} parent=1 // pred_fallthru
      _
    %761 = vsyncpa [#allocation3], 1
    %762 = vsyncpa [#allocation6], 1
    %763 = vsyncpa [#allocation4], 1

// kernel: tpu_custom_call.1
$region0: #{tpu_custom_call.1}
  #allocation0 [shape = 'u32[]', space=smem, size = 0x4, offset = 0x4, fixed_abs, tag = 'smem constant byte address 0x4 - core index']
  #allocation1 [shape = 'u32[72,128]{1,0:T(1,128)}', space=vmem, size = 0x9000, scoped, tag = 'internal scratch']
  %s0 = inlined_call_operand.hbm [shape: f32[256,128], index: 0, kind: input, shape index: {}]
  %s1 = inlined_call_operand.hbm [shape: f32[4,128,128], index: 1, kind: input, shape index: {}]
  %s2 = inlined_call_operand.hbm [shape: f32[4,128], index: 2, kind: input, shape index: {}]
  %s3 = inlined_call_operand.hbm [shape: f32[256,128], index: 3, kind: output, shape index: {}]
  %s4 = sld [smem:[#allocation0]]
  $region34: #{tpu_custom_call.1} parent=0
    _
  %s6 = ssub.s32 1, %s4
  %s7 = scalar_select 0, %s6, %s4
  $region1: #{tpu_custom_call.1} parent=0
    #allocation2 [shape = 'u8[131072]{0}', space=vmem, size = 0x20000, scoped, tag = 'input window, operand 0, single buffered']
    #allocation3 [shape = 's32[1]{0}', space=sflag, size = 0x4, scoped, tag = 'scoped memory for tpu_custom_call.1']
    #allocation4 [shape = 's32[1]{0}', space=sflag, size = 0x4, scoped, tag = 'scoped memory for tpu_custom_call.1']
    #allocation5 [shape = 'u8[262144]{0}', space=vmem, size = 0x40000, scoped, tag = 'input window, operand 1, single buffered']
    #allocation6 [shape = 's32[1]{0}', space=sflag, size = 0x4, scoped, tag = 'scoped memory for tpu_custom_call.1']
    #allocation7 [shape = 'u8[2048]{0}', space=vmem, size = 0x800, scoped, tag = 'input window, operand 2, single buffered']
    #allocation8 [shape = 'u8[131072]{0}', space=vmem, size = 0x20000, scoped, tag = 'output window, operand 0, single buffered']
    %8 = vsyncpa [#allocation3], 0
    %9 = vsyncpa [#allocation6], 0
    %10 = vsyncpa [#allocation4], 0
    // Predicated region
    $region2: #{tpu_custom_call.1} parent=1 // pred_check
      _
    $region3: #{tpu_custom_call.1} parent=1 // pred_check_branch
      %12 = sbr.rel (0) target = $region5
    $region4: #{tpu_custom_call.1} parent=1 // pred_region
      %14 = vsyncadd [#allocation3], 0
      %s15 = sshll.u32 %s0, 4
      %s16 = int_to_ptr.hbm [resolvable:$true] %s15
      %s17 = sshll.u32 [#allocation2], 4
      %s18 = int_to_ptr.vmem [resolvable:$true] %s17
      %23 = dma.hbm_to_vmem [thread:$0]  %s16, 4096, %s18, [#allocation3], 128, 128, 8
    $region5: #{tpu_custom_call.1} parent=1 // pred_fallthru
      _
    // Predicated region
    $region6: #{tpu_custom_call.1} parent=1 // pred_check
      _
    $region7: #{tpu_custom_call.1} parent=1 // pred_check_branch
      %25 = sbr.rel (0) target = $region9
    $region8: #{tpu_custom_call.1} parent=1 // pred_region
      %27 = vsyncadd [#allocation6], 0
      %s28 = sshll.u32 %s1, 4
      %s29 = int_to_ptr.hbm [resolvable:$true] %s28
      %s30 = sshll.u32 [#allocation5], 4
      %s31 = int_to_ptr.vmem [resolvable:$true] %s30
      %36 = dma.hbm_to_vmem [thread:$0]  %s29, 8192, %s31, [#allocation6], 128, 128, 8
    $region9: #{tpu_custom_call.1} parent=1 // pred_fallthru
      _
    // Predicated region
    $region10: #{tpu_custom_call.1} parent=1 // pred_check
      _
    $region11: #{tpu_custom_call.1} parent=1 // pred_check_branch
      %38 = sbr.rel (0) target = $region13
    $region12: #{tpu_custom_call.1} parent=1 // pred_region
      %40 = vsyncadd [#allocation6], 0
      %s42 = sshll.u32 %s2, 4
      %s43 = int_to_ptr.hbm [resolvable:$true] %s42
      %s44 = sshll.u32 [#allocation7], 4
      %s45 = int_to_ptr.vmem [resolvable:$true] %s44
      %47 = dma.hbm_to_vmem [thread:$0]  %s43, 64, %s45, [#allocation6]
    $region13: #{tpu_custom_call.1} parent=1 // pred_fallthru
      _
    // Predicated region
    $region14: #{tpu_custom_call.1} parent=1 // pred_check
      _
    $region15: #{tpu_custom_call.1} parent=1 // pred_check_branch
      %49 = sbr.rel (0) target = $region17
    $region16: #{tpu_custom_call.1} parent=1 // pred_region
      %51 = dma.done [#allocation3], 4096
    $region17: #{tpu_custom_call.1} parent=1 // pred_fallthru
      _
    // Predicated region
    $region18: #{tpu_custom_call.1} parent=1 // pred_check
      _
    $region19: #{tpu_custom_call.1} parent=1 // pred_check_branch
      %53 = sbr.rel (0) target = $region21
    $region20: #{tpu_custom_call.1} parent=1 // pred_region
      %55 = dma.done [#allocation6], 8192
    $region21: #{tpu_custom_call.1} parent=1 // pred_fallthru
      _
    // Predicated region
    $region22: #{tpu_custom_call.1} parent=1 // pred_check
      _
    $region23: #{tpu_custom_call.1} parent=1 // pred_check_branch
      %57 = sbr.rel (0) target = $region25
    $region24: #{tpu_custom_call.1} parent=1 // pred_region
      %59 = dma.done [#allocation6], 64
    $region25: #{tpu_custom_call.1} parent=1 // pred_fallthru
      _
    %v60 = vld [vmem:[#allocation7] sm:$0xf]
    %v61 = vld [vmem:[#allocation2] sm:$0xff]
    %v62 = vld [vmem:[#allocation2 + $0x8] sm:$0xff]
    %v63 = vld [vmem:[#allocation2 + $0x10] sm:$0xff]
    %v64 = vld [vmem:[#allocation2 + $0x18] sm:$0xff]
    %v65 = vld [vmem:[#allocation2 + $0x20] sm:$0xff]
    %v66 = vld [vmem:[#allocation2 + $0x28] sm:$0xff]
    %v67 = vld [vmem:[#allocation2 + $0x30] sm:$0xff]
    %v68 = vld [vmem:[#allocation2 + $0x38] sm:$0xff]
    %v69 = vld [vmem:[#allocation2 + $0x40] sm:$0xff]
    %v70 = vld [vmem:[#allocation2 + $0x48] sm:$0xff]
    %v71 = vld [vmem:[#allocation2 + $0x50] sm:$0xff]
    %v72 = vld [vmem:[#allocation2 + $0x58] sm:$0xff]
    %v73 = vld [vmem:[#allocation2 + $0x60] sm:$0xff]
    %v74 = vld [vmem:[#allocation2 + $0x68] sm:$0xff]
    %v75 = vld [vmem:[#allocation2 + $0x70] sm:$0xff]
    %v76 = vld [vmem:[#allocation2 + $0x78] sm:$0xff]
    %v77 = vld [vmem:[#allocation2 + $0x80] sm:$0xff]
    %v78 = vld [vmem:[#allocation2 + $0x88] sm:$0xff]
    %v79 = vld [vmem:[#allocation2 + $0x90] sm:$0xff]
    %v80 = vld [vmem:[#allocation2 + $0x98] sm:$0xff]
    %v81 = vld [vmem:[#allocation2 + $0xa0] sm:$0xff]
    %v82 = vld [vmem:[#allocation2 + $0xa8] sm:$0xff]
    %v83 = vld [vmem:[#allocation2 + $0xb0] sm:$0xff]
    %v84 = vld [vmem:[#allocation2 + $0xb8] sm:$0xff]
    %v85 = vld [vmem:[#allocation2 + $0xc0] sm:$0xff]
    %v86 = vld [vmem:[#allocation2 + $0xc8] sm:$0xff]
    %v87 = vld [vmem:[#allocation2 + $0xd0] sm:$0xff]
    %v88 = vld [vmem:[#allocation2 + $0xd8] sm:$0xff]
    %v89 = vld [vmem:[#allocation2 + $0xe0] sm:$0xff]
    %v90 = vld [vmem:[#allocation2 + $0xe8] sm:$0xff]
    %v91 = vld [vmem:[#allocation2 + $0xf0] sm:$0xff]
    %v92 = vld [vmem:[#allocation2 + $0xf8] sm:$0xff]
    %v93 = vld [vmem:[#allocation5] sm:$0xff]
    %v94 = vld [vmem:[#allocation5 + $0x8] sm:$0xff]
    %v95 = vld [vmem:[#allocation5 + $0x10] sm:$0xff]
    %v96 = vld [vmem:[#allocation5 + $0x18] sm:$0xff]
    %v97 = vld [vmem:[#allocation5 + $0x20] sm:$0xff]
    %v98 = vld [vmem:[#allocation5 + $0x28] sm:$0xff]
    %v99 = vld [vmem:[#allocation5 + $0x30] sm:$0xff]
    %v100 = vld [vmem:[#allocation5 + $0x38] sm:$0xff]
    %v101 = vld [vmem:[#allocation5 + $0x40] sm:$0xff]
    %v102 = vld [vmem:[#allocation5 + $0x48] sm:$0xff]
    %v103 = vld [vmem:[#allocation5 + $0x50] sm:$0xff]
    %v104 = vld [vmem:[#allocation5 + $0x58] sm:$0xff]
    %v105 = vld [vmem:[#allocation5 + $0x60] sm:$0xff]
    %v106 = vld [vmem:[#allocation5 + $0x68] sm:$0xff]
    %v107 = vld [vmem:[#allocation5 + $0x70] sm:$0xff]
    %v108 = vld [vmem:[#allocation5 + $0x78] sm:$0xff]
    %v109 = vperm.slane %v60, 0
    %110 = vmatpush.msra.mxu0 %v108
    %111 = vmatpush.msra.mxu0 %v107
    %112 = vmatpush.msra.mxu0 %v106
    %113 = vmatpush.msra.mxu0 %v105
    %114 = vmatpush.msra.mxu0 %v104
    %115 = vmatpush.msra.mxu0 %v103
    %116 = vmatpush.msra.mxu0 %v102
    %117 = vmatpush.msra.mxu0 %v101
    %118 = vmatpush.msra.mxu0 %v100
    %119 = vmatpush.msra.mxu0 %v99
    %120 = vmatpush.msra.mxu0 %v98
    %121 = vmatpush.msra.mxu0 %v97
    %122 = vmatpush.msra.mxu0 %v96
    %123 = vmatpush.msra.mxu0 %v95
    %124 = vmatpush.msra.mxu0 %v94
    %125 = vmatpush.msra.mxu0 %v93
    %126 = vmatmul.f32.gmra.mxu0 %v61
    %v127 = vpop.f32.mrf.mxu0
    %v128 = vadd.f32 %v109, %v127
    %129 = vmatmul.f32.gmra.mxu0 %v62
    %v130 = vpop.f32.mrf.mxu0
    %v131 = vadd.f32 %v109, %v130
    %132 = vmatmul.f32.gmra.mxu0 %v63
    %v133 = vpop.f32.mrf.mxu0
    %v134 = vadd.f32 %v109, %v133
    %135 = vmatmul.f32.gmra.mxu0 %v64
    %v136 = vpop.f32.mrf.mxu0
    %v137 = vadd.f32 %v109, %v136
    %138 = vmatmul.f32.gmra.mxu0 %v65
    %v139 = vpop.f32.mrf.mxu0
    %v140 = vadd.f32 %v109, %v139
    %141 = vmatmul.f32.gmra.mxu0 %v66
    %v142 = vpop.f32.mrf.mxu0
    %v143 = vadd.f32 %v109, %v142
    %144 = vmatmul.f32.gmra.mxu0 %v67
    %v145 = vpop.f32.mrf.mxu0
    %v146 = vadd.f32 %v109, %v145
    %147 = vmatmul.f32.gmra.mxu0 %v68
    %v148 = vpop.f32.mrf.mxu0
    %v149 = vadd.f32 %v109, %v148
    %150 = vmatmul.f32.gmra.mxu0 %v69
    %v151 = vpop.f32.mrf.mxu0
    %v152 = vadd.f32 %v109, %v151
    %153 = vmatmul.f32.gmra.mxu0 %v70
    %v154 = vpop.f32.mrf.mxu0
    %v155 = vadd.f32 %v109, %v154
    %156 = vmatmul.f32.gmra.mxu0 %v71
    %v157 = vpop.f32.mrf.mxu0
    %v158 = vadd.f32 %v109, %v157
    %159 = vmatmul.f32.gmra.mxu0 %v72
    %v160 = vpop.f32.mrf.mxu0
    %v161 = vadd.f32 %v109, %v160
    %162 = vmatmul.f32.gmra.mxu0 %v73
    %v163 = vpop.f32.mrf.mxu0
    %v164 = vadd.f32 %v109, %v163
    %165 = vmatmul.f32.gmra.mxu0 %v74
    %v166 = vpop.f32.mrf.mxu0
    %v167 = vadd.f32 %v109, %v166
    %168 = vmatmul.f32.gmra.mxu0 %v75
    %v169 = vpop.f32.mrf.mxu0
    %v170 = vadd.f32 %v109, %v169
    %171 = vmatmul.f32.gmra.mxu0 %v76
    %v172 = vpop.f32.mrf.mxu0
    %v173 = vadd.f32 %v109, %v172
    %174 = vmatmul.f32.gmra.mxu0 %v77
    %v175 = vpop.f32.mrf.mxu0
    %v176 = vadd.f32 %v109, %v175
    %177 = vmatmul.f32.gmra.mxu0 %v78
    %v178 = vpop.f32.mrf.mxu0
    %v179 = vadd.f32 %v109, %v178
    %180 = vmatmul.f32.gmra.mxu0 %v79
    %v181 = vpop.f32.mrf.mxu0
    %v182 = vadd.f32 %v109, %v181
    %183 = vmatmul.f32.gmra.mxu0 %v80
    %v184 = vpop.f32.mrf.mxu0
    %v185 = vadd.f32 %v109, %v184
    %186 = vmatmul.f32.gmra.mxu0 %v81
    %v187 = vpop.f32.mrf.mxu0
    %v188 = vadd.f32 %v109, %v187
    %189 = vmatmul.f32.gmra.mxu0 %v82
    %v190 = vpop.f32.mrf.mxu0
    %v191 = vadd.f32 %v109, %v190
    %192 = vmatmul.f32.gmra.mxu0 %v83
    %v193 = vpop.f32.mrf.mxu0
    %v194 = vadd.f32 %v109, %v193
    %195 = vmatmul.f32.gmra.mxu0 %v84
    %v196 = vpop.f32.mrf.mxu0
    %v197 = vadd.f32 %v109, %v196
    %198 = vmatmul.f32.gmra.mxu0 %v85
    %v199 = vpop.f32.mrf.mxu0
    %v200 = vadd.f32 %v109, %v199
    %201 = vmatmul.f32.gmra.mxu0 %v86
    %v202 = vpop.f32.mrf.mxu0
    %v203 = vadd.f32 %v109, %v202
    %204 = vmatmul.f32.gmra.mxu0 %v87
    %v205 = vpop.f32.mrf.mxu0
    %v206 = vadd.f32 %v109, %v205
    %207 = vmatmul.f32.gmra.mxu0 %v88
    %v208 = vpop.f32.mrf.mxu0
    %v209 = vadd.f32 %v109, %v208
    %210 = vmatmul.f32.gmra.mxu0 %v89
    %v211 = vpop.f32.mrf.mxu0
    %v212 = vadd.f32 %v109, %v211
    %213 = vmatmul.f32.gmra.mxu0 %v90
    %v214 = vpop.f32.mrf.mxu0
    %v215 = vadd.f32 %v109, %v214
    %216 = vmatmul.f32.gmra.mxu0 %v91
    %v217 = vpop.f32.mrf.mxu0
    %v218 = vadd.f32 %v109, %v217
    %219 = vmatmul.f32.gmra.mxu0 %v92
    %v220 = vpop.f32.mrf.mxu0
    %v221 = vadd.f32 %v109, %v220
    %222 = vdwg.mxu0
    %v223 = vmax.f32 %v128, 0.0
    %v224 = vmax.f32 %v131, 0.0
    %v225 = vmax.f32 %v134, 0.0
    %v226 = vmax.f32 %v137, 0.0
    %v227 = vmax.f32 %v140, 0.0
    %v228 = vmax.f32 %v143, 0.0
    %v229 = vmax.f32 %v146, 0.0
    %v230 = vmax.f32 %v149, 0.0
    %v231 = vmax.f32 %v152, 0.0
    %v232 = vmax.f32 %v155, 0.0
    %v233 = vmax.f32 %v158, 0.0
    %v234 = vmax.f32 %v161, 0.0
    %v235 = vmax.f32 %v164, 0.0
    %v236 = vmax.f32 %v167, 0.0
    %v237 = vmax.f32 %v170, 0.0
    %v238 = vmax.f32 %v173, 0.0
    %v239 = vmax.f32 %v176, 0.0
    %v240 = vmax.f32 %v179, 0.0
    %v241 = vmax.f32 %v182, 0.0
    %v242 = vmax.f32 %v185, 0.0
    %v243 = vmax.f32 %v188, 0.0
    %v244 = vmax.f32 %v191, 0.0
    %v245 = vmax.f32 %v194, 0.0
    %v246 = vmax.f32 %v197, 0.0
    %v247 = vmax.f32 %v200, 0.0
    %v248 = vmax.f32 %v203, 0.0
    %v249 = vmax.f32 %v206, 0.0
    %v250 = vmax.f32 %v209, 0.0
    %v251 = vmax.f32 %v212, 0.0
    %v252 = vmax.f32 %v215, 0.0
    %v253 = vmax.f32 %v218, 0.0
    %v254 = vmax.f32 %v221, 0.0
    %s255 = scalar_lea.vmem [#allocation5], 128
    %v256 = vld [vmem:[%s255] sm:$0xff]
    %v257 = vld [vmem:[%s255 + $0x8] sm:$0xff]
    %v258 = vld [vmem:[%s255 + $0x10] sm:$0xff]
    %v259 = vld [vmem:[%s255 + $0x18] sm:$0xff]
    %v260 = vld [vmem:[%s255 + $0x20] sm:$0xff]
    %v261 = vld [vmem:[%s255 + $0x28] sm:$0xff]
    %v262 = vld [vmem:[%s255 + $0x30] sm:$0xff]
    %v263 = vld [vmem:[%s255 + $0x38] sm:$0xff]
    %v264 = vld [vmem:[%s255 + $0x40] sm:$0xff]
    %v265 = vld [vmem:[%s255 + $0x48] sm:$0xff]
    %v266 = vld [vmem:[%s255 + $0x50] sm:$0xff]
    %v267 = vld [vmem:[%s255 + $0x58] sm:$0xff]
    %v268 = vld [vmem:[%s255 + $0x60] sm:$0xff]
    %v269 = vld [vmem:[%s255 + $0x68] sm:$0xff]
    %v270 = vld [vmem:[%s255 + $0x70] sm:$0xff]
    %v271 = vld [vmem:[%s255 + $0x78] sm:$0xff]
    %v272 = vperm.slane %v60, 1
    %273 = vmatpush.msra.mxu0 %v271
    %274 = vmatpush.msra.mxu0 %v270
    %275 = vmatpush.msra.mxu0 %v269
    %276 = vmatpush.msra.mxu0 %v268
    %277 = vmatpush.msra.mxu0 %v267
    %278 = vmatpush.msra.mxu0 %v266
    %279 = vmatpush.msra.mxu0 %v265
    %280 = vmatpush.msra.mxu0 %v264
    %281 = vmatpush.msra.mxu0 %v263
    %282 = vmatpush.msra.mxu0 %v262
    %283 = vmatpush.msra.mxu0 %v261
    %284 = vmatpush.msra.mxu0 %v260
    %285 = vmatpush.msra.mxu0 %v259
    %286 = vmatpush.msra.mxu0 %v258
    %287 = vmatpush.msra.mxu0 %v257
    %288 = vmatpush.msra.mxu0 %v256
    %289 = vmatmul.f32.gmra.mxu0 %v223
    %v290 = vpop.f32.mrf.mxu0
    %v291 = vadd.f32 %v272, %v290
    %292 = vmatmul.f32.gmra.mxu0 %v224
    %v293 = vpop.f32.mrf.mxu0
    %v294 = vadd.f32 %v272, %v293
    %295 = vmatmul.f32.gmra.mxu0 %v225
    %v296 = vpop.f32.mrf.mxu0
    %v297 = vadd.f32 %v272, %v296
    %298 = vmatmul.f32.gmra.mxu0 %v226
    %v299 = vpop.f32.mrf.mxu0
    %v300 = vadd.f32 %v272, %v299
    %301 = vmatmul.f32.gmra.mxu0 %v227
    %v302 = vpop.f32.mrf.mxu0
    %v303 = vadd.f32 %v272, %v302
    %304 = vmatmul.f32.gmra.mxu0 %v228
    %v305 = vpop.f32.mrf.mxu0
    %v306 = vadd.f32 %v272, %v305
    %307 = vmatmul.f32.gmra.mxu0 %v229
    %v308 = vpop.f32.mrf.mxu0
    %v309 = vadd.f32 %v272, %v308
    %310 = vmatmul.f32.gmra.mxu0 %v230
    %v311 = vpop.f32.mrf.mxu0
    %v312 = vadd.f32 %v272, %v311
    %313 = vmatmul.f32.gmra.mxu0 %v231
    %v314 = vpop.f32.mrf.mxu0
    %v315 = vadd.f32 %v272, %v314
    %316 = vmatmul.f32.gmra.mxu0 %v232
    %v317 = vpop.f32.mrf.mxu0
    %v318 = vadd.f32 %v272, %v317
    %319 = vmatmul.f32.gmra.mxu0 %v233
    %v320 = vpop.f32.mrf.mxu0
    %v321 = vadd.f32 %v272, %v320
    %322 = vmatmul.f32.gmra.mxu0 %v234
    %v323 = vpop.f32.mrf.mxu0
    %v324 = vadd.f32 %v272, %v323
    %325 = vmatmul.f32.gmra.mxu0 %v235
    %v326 = vpop.f32.mrf.mxu0
    %v327 = vadd.f32 %v272, %v326
    %328 = vmatmul.f32.gmra.mxu0 %v236
    %v329 = vpop.f32.mrf.mxu0
    %v330 = vadd.f32 %v272, %v329
    %331 = vmatmul.f32.gmra.mxu0 %v237
    %v332 = vpop.f32.mrf.mxu0
    %v333 = vadd.f32 %v272, %v332
    %334 = vmatmul.f32.gmra.mxu0 %v238
    %v335 = vpop.f32.mrf.mxu0
    %v336 = vadd.f32 %v272, %v335
    %337 = vmatmul.f32.gmra.mxu0 %v239
    %v338 = vpop.f32.mrf.mxu0
    %v339 = vadd.f32 %v272, %v338
    %340 = vmatmul.f32.gmra.mxu0 %v240
    %v341 = vpop.f32.mrf.mxu0
    %v342 = vadd.f32 %v272, %v341
    %343 = vmatmul.f32.gmra.mxu0 %v241
    %v344 = vpop.f32.mrf.mxu0
    %v345 = vadd.f32 %v272, %v344
    %346 = vmatmul.f32.gmra.mxu0 %v242
    %v347 = vpop.f32.mrf.mxu0
    %v348 = vadd.f32 %v272, %v347
    %349 = vmatmul.f32.gmra.mxu0 %v243
    %v350 = vpop.f32.mrf.mxu0
    %v351 = vadd.f32 %v272, %v350
    %352 = vmatmul.f32.gmra.mxu0 %v244
    %v353 = vpop.f32.mrf.mxu0
    %v354 = vadd.f32 %v272, %v353
    %355 = vmatmul.f32.gmra.mxu0 %v245
    %v356 = vpop.f32.mrf.mxu0
    %v357 = vadd.f32 %v272, %v356
    %358 = vmatmul.f32.gmra.mxu0 %v246
    %v359 = vpop.f32.mrf.mxu0
    %v360 = vadd.f32 %v272, %v359
    %361 = vmatmul.f32.gmra.mxu0 %v247
    %v362 = vpop.f32.mrf.mxu0
    %v363 = vadd.f32 %v272, %v362
    %364 = vmatmul.f32.gmra.mxu0 %v248
    %v365 = vpop.f32.mrf.mxu0
    %v366 = vadd.f32 %v272, %v365
    %367 = vmatmul.f32.gmra.mxu0 %v249
    %v368 = vpop.f32.mrf.mxu0
    %v369 = vadd.f32 %v272, %v368
    %370 = vmatmul.f32.gmra.mxu0 %v250
    %v371 = vpop.f32.mrf.mxu0
    %v372 = vadd.f32 %v272, %v371
    %373 = vmatmul.f32.gmra.mxu0 %v251
    %v374 = vpop.f32.mrf.mxu0
    %v375 = vadd.f32 %v272, %v374
    %376 = vmatmul.f32.gmra.mxu0 %v252
    %v377 = vpop.f32.mrf.mxu0
    %v378 = vadd.f32 %v272, %v377
    %379 = vmatmul.f32.gmra.mxu0 %v253
    %v380 = vpop.f32.mrf.mxu0
    %v381 = vadd.f32 %v272, %v380
    %382 = vmatmul.f32.gmra.mxu0 %v254
    %v383 = vpop.f32.mrf.mxu0
    %v384 = vadd.f32 %v272, %v383
    %385 = vdwg.mxu0
    %v386 = vmax.f32 %v291, 0.0
    %v387 = vmax.f32 %v294, 0.0
    %v388 = vmax.f32 %v297, 0.0
    %v389 = vmax.f32 %v300, 0.0
    %v390 = vmax.f32 %v303, 0.0
    %v391 = vmax.f32 %v306, 0.0
    %v392 = vmax.f32 %v309, 0.0
    %v393 = vmax.f32 %v312, 0.0
    %v394 = vmax.f32 %v315, 0.0
    %v395 = vmax.f32 %v318, 0.0
    %v396 = vmax.f32 %v321, 0.0
    %v397 = vmax.f32 %v324, 0.0
    %v398 = vmax.f32 %v327, 0.0
    %v399 = vmax.f32 %v330, 0.0
    %v400 = vmax.f32 %v333, 0.0
    %v401 = vmax.f32 %v336, 0.0
    %v402 = vmax.f32 %v339, 0.0
    %v403 = vmax.f32 %v342, 0.0
    %v404 = vmax.f32 %v345, 0.0
    %v405 = vmax.f32 %v348, 0.0
    %v406 = vmax.f32 %v351, 0.0
    %v407 = vmax.f32 %v354, 0.0
    %v408 = vmax.f32 %v357, 0.0
    %v409 = vmax.f32 %v360, 0.0
    %v410 = vmax.f32 %v363, 0.0
    %v411 = vmax.f32 %v366, 0.0
    %v412 = vmax.f32 %v369, 0.0
    %v413 = vmax.f32 %v372, 0.0
    %v414 = vmax.f32 %v375, 0.0
    %v415 = vmax.f32 %v378, 0.0
    %v416 = vmax.f32 %v381, 0.0
    %v417 = vmax.f32 %v384, 0.0
    %s418 = scalar_lea.vmem [#allocation5], 256
    %v419 = vld [vmem:[%s418] sm:$0xff]
    %v420 = vld [vmem:[%s418 + $0x8] sm:$0xff]
    %v421 = vld [vmem:[%s418 + $0x10] sm:$0xff]
    %v422 = vld [vmem:[%s418 + $0x18] sm:$0xff]
    %v423 = vld [vmem:[%s418 + $0x20] sm:$0xff]
    %v424 = vld [vmem:[%s418 + $0x28] sm:$0xff]
    %v425 = vld [vmem:[%s418 + $0x30] sm:$0xff]
    %v426 = vld [vmem:[%s418 + $0x38] sm:$0xff]
    %v427 = vld [vmem:[%s418 + $0x40] sm:$0xff]
    %v428 = vld [vmem:[%s418 + $0x48] sm:$0xff]
    %v429 = vld [vmem:[%s418 + $0x50] sm:$0xff]
    %v430 = vld [vmem:[%s418 + $0x58] sm:$0xff]
    %v431 = vld [vmem:[%s418 + $0x60] sm:$0xff]
    %v432 = vld [vmem:[%s418 + $0x68] sm:$0xff]
    %v433 = vld [vmem:[%s418 + $0x70] sm:$0xff]
    %v434 = vld [vmem:[%s418 + $0x78] sm:$0xff]
    %v435 = vperm.slane %v60, 2
    %436 = vmatpush.msra.mxu0 %v434
    %437 = vmatpush.msra.mxu0 %v433
    %438 = vmatpush.msra.mxu0 %v432
    %439 = vmatpush.msra.mxu0 %v431
    %440 = vmatpush.msra.mxu0 %v430
    %441 = vmatpush.msra.mxu0 %v429
    %442 = vmatpush.msra.mxu0 %v428
    %443 = vmatpush.msra.mxu0 %v427
    %444 = vmatpush.msra.mxu0 %v426
    %445 = vmatpush.msra.mxu0 %v425
    %446 = vmatpush.msra.mxu0 %v424
    %447 = vmatpush.msra.mxu0 %v423
    %448 = vmatpush.msra.mxu0 %v422
    %449 = vmatpush.msra.mxu0 %v421
    %450 = vmatpush.msra.mxu0 %v420
    %451 = vmatpush.msra.mxu0 %v419
    %452 = vmatmul.f32.gmra.mxu0 %v386
    %v453 = vpop.f32.mrf.mxu0
    %v454 = vadd.f32 %v435, %v453
    %455 = vmatmul.f32.gmra.mxu0 %v387
    %v456 = vpop.f32.mrf.mxu0
    %v457 = vadd.f32 %v435, %v456
    %458 = vmatmul.f32.gmra.mxu0 %v388
    %v459 = vpop.f32.mrf.mxu0
    %v460 = vadd.f32 %v435, %v459
    %461 = vmatmul.f32.gmra.mxu0 %v389
    %v462 = vpop.f32.mrf.mxu0
    %v463 = vadd.f32 %v435, %v462
    %464 = vmatmul.f32.gmra.mxu0 %v390
    %v465 = vpop.f32.mrf.mxu0
    %v466 = vadd.f32 %v435, %v465
    %467 = vmatmul.f32.gmra.mxu0 %v391
    %v468 = vpop.f32.mrf.mxu0
    %v469 = vadd.f32 %v435, %v468
    %470 = vmatmul.f32.gmra.mxu0 %v392
    %v471 = vpop.f32.mrf.mxu0
    %v472 = vadd.f32 %v435, %v471
    %473 = vmatmul.f32.gmra.mxu0 %v393
    %v474 = vpop.f32.mrf.mxu0
    %v475 = vadd.f32 %v435, %v474
    %476 = vmatmul.f32.gmra.mxu0 %v394
    %v477 = vpop.f32.mrf.mxu0
    %v478 = vadd.f32 %v435, %v477
    %479 = vmatmul.f32.gmra.mxu0 %v395
    %v480 = vpop.f32.mrf.mxu0
    %v481 = vadd.f32 %v435, %v480
    %482 = vmatmul.f32.gmra.mxu0 %v396
    %v483 = vpop.f32.mrf.mxu0
    %v484 = vadd.f32 %v435, %v483
    %485 = vmatmul.f32.gmra.mxu0 %v397
    %v486 = vpop.f32.mrf.mxu0
    %v487 = vadd.f32 %v435, %v486
    %488 = vmatmul.f32.gmra.mxu0 %v398
    %v489 = vpop.f32.mrf.mxu0
    %v490 = vadd.f32 %v435, %v489
    %491 = vmatmul.f32.gmra.mxu0 %v399
    %v492 = vpop.f32.mrf.mxu0
    %v493 = vadd.f32 %v435, %v492
    %494 = vmatmul.f32.gmra.mxu0 %v400
    %v495 = vpop.f32.mrf.mxu0
    %v496 = vadd.f32 %v435, %v495
    %497 = vmatmul.f32.gmra.mxu0 %v401
    %v498 = vpop.f32.mrf.mxu0
    %v499 = vadd.f32 %v435, %v498
    %500 = vmatmul.f32.gmra.mxu0 %v402
    %v501 = vpop.f32.mrf.mxu0
    %v502 = vadd.f32 %v435, %v501
    %503 = vmatmul.f32.gmra.mxu0 %v403
    %v504 = vpop.f32.mrf.mxu0
    %v505 = vadd.f32 %v435, %v504
    %506 = vmatmul.f32.gmra.mxu0 %v404
    %v507 = vpop.f32.mrf.mxu0
    %v508 = vadd.f32 %v435, %v507
    %509 = vmatmul.f32.gmra.mxu0 %v405
    %v510 = vpop.f32.mrf.mxu0
    %v511 = vadd.f32 %v435, %v510
    %512 = vmatmul.f32.gmra.mxu0 %v406
    %v513 = vpop.f32.mrf.mxu0
    %v514 = vadd.f32 %v435, %v513
    %515 = vmatmul.f32.gmra.mxu0 %v407
    %v516 = vpop.f32.mrf.mxu0
    %v517 = vadd.f32 %v435, %v516
    %518 = vmatmul.f32.gmra.mxu0 %v408
    %v519 = vpop.f32.mrf.mxu0
    %v520 = vadd.f32 %v435, %v519
    %521 = vmatmul.f32.gmra.mxu0 %v409
    %v522 = vpop.f32.mrf.mxu0
    %v523 = vadd.f32 %v435, %v522
    %524 = vmatmul.f32.gmra.mxu0 %v410
    %v525 = vpop.f32.mrf.mxu0
    %v526 = vadd.f32 %v435, %v525
    %527 = vmatmul.f32.gmra.mxu0 %v411
    %v528 = vpop.f32.mrf.mxu0
    %v529 = vadd.f32 %v435, %v528
    %530 = vmatmul.f32.gmra.mxu0 %v412
    %v531 = vpop.f32.mrf.mxu0
    %v532 = vadd.f32 %v435, %v531
    %533 = vmatmul.f32.gmra.mxu0 %v413
    %v534 = vpop.f32.mrf.mxu0
    %v535 = vadd.f32 %v435, %v534
    %536 = vmatmul.f32.gmra.mxu0 %v414
    %v537 = vpop.f32.mrf.mxu0
    %v538 = vadd.f32 %v435, %v537
    %539 = vmatmul.f32.gmra.mxu0 %v415
    %v540 = vpop.f32.mrf.mxu0
    %v541 = vadd.f32 %v435, %v540
    %542 = vmatmul.f32.gmra.mxu0 %v416
    %v543 = vpop.f32.mrf.mxu0
    %v544 = vadd.f32 %v435, %v543
    %545 = vmatmul.f32.gmra.mxu0 %v417
    %v546 = vpop.f32.mrf.mxu0
    %v547 = vadd.f32 %v435, %v546
    %548 = vdwg.mxu0
    %v549 = vmax.f32 %v454, 0.0
    %v550 = vmax.f32 %v457, 0.0
    %v551 = vmax.f32 %v460, 0.0
    %v552 = vmax.f32 %v463, 0.0
    %v553 = vmax.f32 %v466, 0.0
    %v554 = vmax.f32 %v469, 0.0
    %v555 = vmax.f32 %v472, 0.0
    %v556 = vmax.f32 %v475, 0.0
    %v557 = vmax.f32 %v478, 0.0
    %v558 = vmax.f32 %v481, 0.0
    %v559 = vmax.f32 %v484, 0.0
    %v560 = vmax.f32 %v487, 0.0
    %v561 = vmax.f32 %v490, 0.0
    %v562 = vmax.f32 %v493, 0.0
    %v563 = vmax.f32 %v496, 0.0
    %v564 = vmax.f32 %v499, 0.0
    %v565 = vmax.f32 %v502, 0.0
    %v566 = vmax.f32 %v505, 0.0
    %v567 = vmax.f32 %v508, 0.0
    %v568 = vmax.f32 %v511, 0.0
    %v569 = vmax.f32 %v514, 0.0
    %v570 = vmax.f32 %v517, 0.0
    %v571 = vmax.f32 %v520, 0.0
    %v572 = vmax.f32 %v523, 0.0
    %v573 = vmax.f32 %v526, 0.0
    %v574 = vmax.f32 %v529, 0.0
    %v575 = vmax.f32 %v532, 0.0
    %v576 = vmax.f32 %v535, 0.0
    %v577 = vmax.f32 %v538, 0.0
    %v578 = vmax.f32 %v541, 0.0
    %v579 = vmax.f32 %v544, 0.0
    %v580 = vmax.f32 %v547, 0.0
    %s581 = scalar_lea.vmem [#allocation5], 384
    %v582 = vld [vmem:[%s581] sm:$0xff]
    %v583 = vld [vmem:[%s581 + $0x8] sm:$0xff]
    %v584 = vld [vmem:[%s581 + $0x10] sm:$0xff]
    %v585 = vld [vmem:[%s581 + $0x18] sm:$0xff]
    %v586 = vld [vmem:[%s581 + $0x20] sm:$0xff]
    %v587 = vld [vmem:[%s581 + $0x28] sm:$0xff]
    %v588 = vld [vmem:[%s581 + $0x30] sm:$0xff]
    %v589 = vld [vmem:[%s581 + $0x38] sm:$0xff]
    %v590 = vld [vmem:[%s581 + $0x40] sm:$0xff]
    %v591 = vld [vmem:[%s581 + $0x48] sm:$0xff]
    %v592 = vld [vmem:[%s581 + $0x50] sm:$0xff]
    %v593 = vld [vmem:[%s581 + $0x58] sm:$0xff]
    %v594 = vld [vmem:[%s581 + $0x60] sm:$0xff]
    %v595 = vld [vmem:[%s581 + $0x68] sm:$0xff]
    %v596 = vld [vmem:[%s581 + $0x70] sm:$0xff]
    %v597 = vld [vmem:[%s581 + $0x78] sm:$0xff]
    %v598 = vperm.slane %v60, 3
    %599 = vmatpush.msra.mxu0 %v597
    %600 = vmatpush.msra.mxu0 %v596
    %601 = vmatpush.msra.mxu0 %v595
    %602 = vmatpush.msra.mxu0 %v594
    %603 = vmatpush.msra.mxu0 %v593
    %604 = vmatpush.msra.mxu0 %v592
    %605 = vmatpush.msra.mxu0 %v591
    %606 = vmatpush.msra.mxu0 %v590
    %607 = vmatpush.msra.mxu0 %v589
    %608 = vmatpush.msra.mxu0 %v588
    %609 = vmatpush.msra.mxu0 %v587
    %610 = vmatpush.msra.mxu0 %v586
    %611 = vmatpush.msra.mxu0 %v585
    %612 = vmatpush.msra.mxu0 %v584
    %613 = vmatpush.msra.mxu0 %v583
    %614 = vmatpush.msra.mxu0 %v582
    %615 = vmatmul.f32.gmra.mxu0 %v549
    %v616 = vpop.f32.mrf.mxu0
    %v617 = vadd.f32 %v598, %v616
    %618 = vmatmul.f32.gmra.mxu0 %v550
    %v619 = vpop.f32.mrf.mxu0
    %v620 = vadd.f32 %v598, %v619
    %621 = vmatmul.f32.gmra.mxu0 %v551
    %v622 = vpop.f32.mrf.mxu0
    %v623 = vadd.f32 %v598, %v622
    %624 = vmatmul.f32.gmra.mxu0 %v552
    %v625 = vpop.f32.mrf.mxu0
    %v626 = vadd.f32 %v598, %v625
    %627 = vmatmul.f32.gmra.mxu0 %v553
    %v628 = vpop.f32.mrf.mxu0
    %v629 = vadd.f32 %v598, %v628
    %630 = vmatmul.f32.gmra.mxu0 %v554
    %v631 = vpop.f32.mrf.mxu0
    %v632 = vadd.f32 %v598, %v631
    %633 = vmatmul.f32.gmra.mxu0 %v555
    %v634 = vpop.f32.mrf.mxu0
    %v635 = vadd.f32 %v598, %v634
    %636 = vmatmul.f32.gmra.mxu0 %v556
    %v637 = vpop.f32.mrf.mxu0
    %v638 = vadd.f32 %v598, %v637
    %639 = vmatmul.f32.gmra.mxu0 %v557
    %v640 = vpop.f32.mrf.mxu0
    %v641 = vadd.f32 %v598, %v640
    %642 = vmatmul.f32.gmra.mxu0 %v558
    %v643 = vpop.f32.mrf.mxu0
    %v644 = vadd.f32 %v598, %v643
    %645 = vmatmul.f32.gmra.mxu0 %v559
    %v646 = vpop.f32.mrf.mxu0
    %v647 = vadd.f32 %v598, %v646
    %648 = vmatmul.f32.gmra.mxu0 %v560
    %v649 = vpop.f32.mrf.mxu0
    %v650 = vadd.f32 %v598, %v649
    %651 = vmatmul.f32.gmra.mxu0 %v561
    %v652 = vpop.f32.mrf.mxu0
    %v653 = vadd.f32 %v598, %v652
    %654 = vmatmul.f32.gmra.mxu0 %v562
    %v655 = vpop.f32.mrf.mxu0
    %v656 = vadd.f32 %v598, %v655
    %657 = vmatmul.f32.gmra.mxu0 %v563
    %v658 = vpop.f32.mrf.mxu0
    %v659 = vadd.f32 %v598, %v658
    %660 = vmatmul.f32.gmra.mxu0 %v564
    %v661 = vpop.f32.mrf.mxu0
    %v662 = vadd.f32 %v598, %v661
    %663 = vmatmul.f32.gmra.mxu0 %v565
    %v664 = vpop.f32.mrf.mxu0
    %v665 = vadd.f32 %v598, %v664
    %666 = vmatmul.f32.gmra.mxu0 %v566
    %v667 = vpop.f32.mrf.mxu0
    %v668 = vadd.f32 %v598, %v667
    %669 = vmatmul.f32.gmra.mxu0 %v567
    %v670 = vpop.f32.mrf.mxu0
    %v671 = vadd.f32 %v598, %v670
    %672 = vmatmul.f32.gmra.mxu0 %v568
    %v673 = vpop.f32.mrf.mxu0
    %v674 = vadd.f32 %v598, %v673
    %675 = vmatmul.f32.gmra.mxu0 %v569
    %v676 = vpop.f32.mrf.mxu0
    %v677 = vadd.f32 %v598, %v676
    %678 = vmatmul.f32.gmra.mxu0 %v570
    %v679 = vpop.f32.mrf.mxu0
    %v680 = vadd.f32 %v598, %v679
    %681 = vmatmul.f32.gmra.mxu0 %v571
    %v682 = vpop.f32.mrf.mxu0
    %v683 = vadd.f32 %v598, %v682
    %684 = vmatmul.f32.gmra.mxu0 %v572
    %v685 = vpop.f32.mrf.mxu0
    %v686 = vadd.f32 %v598, %v685
    %687 = vmatmul.f32.gmra.mxu0 %v573
    %v688 = vpop.f32.mrf.mxu0
    %v689 = vadd.f32 %v598, %v688
    %690 = vmatmul.f32.gmra.mxu0 %v574
    %v691 = vpop.f32.mrf.mxu0
    %v692 = vadd.f32 %v598, %v691
    %693 = vmatmul.f32.gmra.mxu0 %v575
    %v694 = vpop.f32.mrf.mxu0
    %v695 = vadd.f32 %v598, %v694
    %696 = vmatmul.f32.gmra.mxu0 %v576
    %v697 = vpop.f32.mrf.mxu0
    %v698 = vadd.f32 %v598, %v697
    %699 = vmatmul.f32.gmra.mxu0 %v577
    %v700 = vpop.f32.mrf.mxu0
    %v701 = vadd.f32 %v598, %v700
    %702 = vmatmul.f32.gmra.mxu0 %v578
    %v703 = vpop.f32.mrf.mxu0
    %v704 = vadd.f32 %v598, %v703
    %705 = vmatmul.f32.gmra.mxu0 %v579
    %v706 = vpop.f32.mrf.mxu0
    %v707 = vadd.f32 %v598, %v706
    %708 = vmatmul.f32.gmra.mxu0 %v580
    %v709 = vpop.f32.mrf.mxu0
    %v710 = vadd.f32 %v598, %v709
    %711 = vdwg.mxu0
    %712 = vst [vmem:[#allocation8] sm:$0xff] %v617
    %713 = vst [vmem:[#allocation8 + $0x8] sm:$0xff] %v620
    %714 = vst [vmem:[#allocation8 + $0x10] sm:$0xff] %v623
    %715 = vst [vmem:[#allocation8 + $0x18] sm:$0xff] %v626
    %716 = vst [vmem:[#allocation8 + $0x20] sm:$0xff] %v629
    %717 = vst [vmem:[#allocation8 + $0x28] sm:$0xff] %v632
    %718 = vst [vmem:[#allocation8 + $0x30] sm:$0xff] %v635
    %719 = vst [vmem:[#allocation8 + $0x38] sm:$0xff] %v638
    %720 = vst [vmem:[#allocation8 + $0x40] sm:$0xff] %v641
    %721 = vst [vmem:[#allocation8 + $0x48] sm:$0xff] %v644
    %722 = vst [vmem:[#allocation8 + $0x50] sm:$0xff] %v647
    %723 = vst [vmem:[#allocation8 + $0x58] sm:$0xff] %v650
    %724 = vst [vmem:[#allocation8 + $0x60] sm:$0xff] %v653
    %725 = vst [vmem:[#allocation8 + $0x68] sm:$0xff] %v656
    %726 = vst [vmem:[#allocation8 + $0x70] sm:$0xff] %v659
    %727 = vst [vmem:[#allocation8 + $0x78] sm:$0xff] %v662
    %728 = vst [vmem:[#allocation8 + $0x80] sm:$0xff] %v665
    %729 = vst [vmem:[#allocation8 + $0x88] sm:$0xff] %v668
    %730 = vst [vmem:[#allocation8 + $0x90] sm:$0xff] %v671
    %731 = vst [vmem:[#allocation8 + $0x98] sm:$0xff] %v674
    %732 = vst [vmem:[#allocation8 + $0xa0] sm:$0xff] %v677
    %733 = vst [vmem:[#allocation8 + $0xa8] sm:$0xff] %v680
    %734 = vst [vmem:[#allocation8 + $0xb0] sm:$0xff] %v683
    %735 = vst [vmem:[#allocation8 + $0xb8] sm:$0xff] %v686
    %736 = vst [vmem:[#allocation8 + $0xc0] sm:$0xff] %v689
    %737 = vst [vmem:[#allocation8 + $0xc8] sm:$0xff] %v692
    %738 = vst [vmem:[#allocation8 + $0xd0] sm:$0xff] %v695
    %739 = vst [vmem:[#allocation8 + $0xd8] sm:$0xff] %v698
    %740 = vst [vmem:[#allocation8 + $0xe0] sm:$0xff] %v701
    %741 = vst [vmem:[#allocation8 + $0xe8] sm:$0xff] %v704
    %742 = vst [vmem:[#allocation8 + $0xf0] sm:$0xff] %v707
    %743 = vst [vmem:[#allocation8 + $0xf8] sm:$0xff] %v710
    // Predicated region
    $region26: #{tpu_custom_call.1} parent=1 // pred_check
      _
    $region27: #{tpu_custom_call.1} parent=1 // pred_check_branch
      %745 = sbr.rel (0) target = $region29
    $region28: #{tpu_custom_call.1} parent=1 // pred_region
      %747 = vsyncadd [#allocation4], 0
      %s748 = sshll.u32 [#allocation8], 4
      %s749 = int_to_ptr.vmem [resolvable:$true] %s748
      %s750 = sshll.u32 %s3, 4
      %s751 = int_to_ptr.hbm [resolvable:$true] %s750
      %756 = dma.vmem_to_hbm [thread:$0]  %s749, 4096, %s751, [#allocation4], 128, 128, 8
    $region29: #{tpu_custom_call.1} parent=1 // pred_fallthru
      _
    // Predicated region
    $region30: #{tpu_custom_call.1} parent=1 // pred_check
      _
    $region31: #{tpu_custom_call.1} parent=1 // pred_check_branch
      %758 = sbr.rel (0) target = $region33
    $region32: #{tpu_custom_call.1} parent=1 // pred_region
      %760 = dma.done [#allocation4], 4096
    $region33: #{tpu_custom_call.1} parent=1 // pred_fallthru
      _
    %761 = vsyncpa [#allocation3], 1
    %762 = vsyncpa [#allocation6], 1
    %763 = vsyncpa [#allocation4], 1

</llo_original>
